<compile_context>
chip_gen: v5e
topology: v5e:2x2
jax: 0.10.0
libtpu: 0.0.40
codegen_flags: <defaults>
</compile_context>

<pallas_src>
from functools import partial

import jax
import jax.numpy as jnp
from jax.experimental import pallas as pl
from jax.experimental.pallas import tpu as pltpu

K = 3          # conv kernel size
DIL = 2        # dilation
PAD = 2        # padding  (=> "same" spatial size for k=3, d=2)
EPS = 1e-6     # InstanceNorm3d eps
NEG_SLOPE = 0.2


def conv_dil_block_kernel(p_ref, w_ref, out_ref, *, n_batch, dhw, inv_dhw):
    """Single grid step, whole batch.

    p_ref   : (KKC_PAD, N*DHW)  bf16 im2col patches, batch folded into lanes (lane-dense)
    w_ref   : (Cout, KKC_PAD)   bf16 im2col weights
    out_ref : (N, Cout, DHW)    f32 fused conv + InstanceNorm + LeakyReLU output
    """
    # Dilated 3D conv for the whole batch as ONE MXU matmul (f32 accumulation).
    acc = jnp.dot(w_ref[...], p_ref[...],
                  preferred_element_type=jnp.float32)            # (Cout, N*DHW)

    # Per-instance InstanceNorm3d (affine=False) + LeakyReLU. n_batch is a small static
    # constant, the lane slices are 128-aligned (dhw is a multiple of 128).
    for n in range(n_batch):
        a = acc[:, n * dhw:(n + 1) * dhw]                        # (Cout, DHW)
        s = jnp.sum(a, axis=1, keepdims=True)                    # (Cout, 1)
        sq = jnp.sum(a * a, axis=1, keepdims=True)               # (Cout, 1)
        mean = s * inv_dhw
        var = jnp.maximum(sq * inv_dhw - mean * mean, 0.0)       # clamp one-pass variance
        scale = jax.lax.rsqrt(var + EPS)
        y = (a - mean) * scale
        out_ref[n] = jnp.where(y >= 0, y, NEG_SLOPE * y)         # LeakyReLU(0.2)


def conv_dil_block(x_ncdhw, w, b=None):
    """x_ncdhw: (N, Cin, D, H, W); w: (K, K, K, Cin, Cout); b: (Cout,) or None.

    Returns NCDHW float32. The conv bias is a mathematical no-op under InstanceNorm
    (removed by mean subtraction), so it is intentionally not used.
    """
    del b
    N, Cin, D, H, W = x_ncdhw.shape
    Cout = w.shape[-1]
    DHW = D * H * W
    KKC = K * K * K * Cin
    KKC_PAD = ((KKC + 127) // 128) * 128   # pad contraction to a clean multiple of 128

    x = x_ncdhw.astype(jnp.float32)
    xpad = jnp.pad(x, ((0, 0), (0, 0), (PAD, PAD), (PAD, PAD), (PAD, PAD)))

    # im2col (pure layout plumbing, fused into the pallas input feed via allow_input_fusion):
    # rows = (tap, cin) contraction order, cols = (n, d, h, w) with batch folded into lanes.
    taps = []
    for kd in range(K):
        for kh in range(K):
            for kw in range(K):
                taps.append(xpad[:, :,
                                 kd * DIL:kd * DIL + D,
                                 kh * DIL:kh * DIL + H,
                                 kw * DIL:kw * DIL + W])
    patches = jnp.stack(taps, axis=0)                              # (27, N, Cin, D, H, W)
    patches = jnp.transpose(patches, (0, 2, 1, 3, 4, 5))           # (27, Cin, N, D, H, W)
    patches = patches.reshape(KKC, N * DHW).astype(jnp.bfloat16)   # (108, 1024) bf16
    if KKC_PAD != KKC:
        patches = jnp.concatenate(
            [patches, jnp.zeros((KKC_PAD - KKC, N * DHW), jnp.bfloat16)], axis=0)

    # Weights -> single 2-D slab (Cout, KKC_PAD), same (tap, cin) contraction order, bf16.
    w2 = jnp.transpose(w.astype(jnp.float32),
                       (4, 0, 1, 2, 3)).reshape(Cout, KKC).astype(jnp.bfloat16)
    if KKC_PAD != KKC:
        w2 = jnp.concatenate(
            [w2, jnp.zeros((Cout, KKC_PAD - KKC), jnp.bfloat16)], axis=1)

    kernel = partial(conv_dil_block_kernel, n_batch=N, dhw=DHW, inv_dhw=1.0 / DHW)

    out_flat = pl.pallas_call(
        kernel,
        out_shape=jax.ShapeDtypeStruct((N, Cout, DHW), jnp.float32),
        grid=(1,),
        in_specs=[
            pl.BlockSpec((KKC_PAD, N * DHW), lambda i: (0, 0)),
            pl.BlockSpec((Cout, KKC_PAD), lambda i: (0, 0)),
        ],
        out_specs=pl.BlockSpec((N, Cout, DHW), lambda i: (0, 0, 0)),
        compiler_params=pltpu.CompilerParams(
            dimension_semantics=("arbitrary",),
            # Allow the im2col producer of input 0 (patches) to fuse into the pallas call's
            # input feed, avoiding the 27x-expanded HBM round trip; weights stay materialized.
            allow_input_fusion=[True, False],
        ),
    )(patches, w2)

    # Output is already lane-dense NC(DHW): plain reshape, no transpose.
    return out_flat.reshape(N, Cout, D, H, W)


def reference(x_ncdhw, w, b):
    """Pure-JAX f32 reference mirroring the PyTorch module (for correctness check)."""
    Cout = w.shape[-1]
    w_oidhw = jnp.transpose(w, (4, 3, 0, 1, 2))                 # (Cout, Cin, K, K, K)
    y = jax.lax.conv_general_dilated(
        x_ncdhw, w_oidhw, window_strides=(1, 1, 1),
        padding=[(PAD, PAD)] * 3, rhs_dilation=(DIL, DIL, DIL),
        dimension_numbers=('NCDHW', 'OIDHW', 'NCDHW'))
    y = y + b.reshape(1, Cout, 1, 1, 1)                         # bias (cancelled by IN below)
    mean = y.mean(axis=(2, 3, 4), keepdims=True)
    var = ((y - mean) ** 2).mean(axis=(2, 3, 4), keepdims=True)
    yn = (y - mean) / jnp.sqrt(var + EPS)
    return jnp.where(yn >= 0, yn, NEG_SLOPE * yn)


if __name__ == "__main__":
    key = jax.random.PRNGKey(0)
    N, Cin, Cout, D, H, W = 2, 4, 8, 8, 8, 8

    kx, kw, kb = jax.random.split(key, 3)
    x = jax.random.normal(kx, (N, Cin, D, H, W), jnp.float32)

    # Xavier (Glorot) uniform init for the conv weight; random bias to exercise the
    # "bias cancels under InstanceNorm" property.
    fan_in = Cin * K ** 3
    fan_out = Cout * K ** 3
    limit = (6.0 / (fan_in + fan_out)) ** 0.5
    w = jax.random.uniform(kw, (K, K, K, Cin, Cout), jnp.float32, -limit, limit)
    b = jax.random.normal(kb, (Cout,), jnp.float32) * 0.1

    # Single jit around wrapper + pallas_call so the im2col producer can input-fuse.
    out = jax.jit(conv_dil_block)(x, w, b)
    out = jax.block_until_ready(out)

    ref = reference(x, w, b)
    assert out.shape == (N, Cout, D, H, W), out.shape
    max_err = float(jnp.abs(out - ref).max())
    # bf16 operands with f32 accumulation vs f32 reference: error is a few 1e-3 on O(1)
    # normalized activations.
    assert jnp.allclose(out, ref, atol=2e-2, rtol=2e-2), max_err

    print("KERNEL_OK")
</pallas_src>

<mosaic_0001>
module attributes {stable_mosaic.version = 11 : i64} {
  func.func @conv_dil_block_kernel(%arg0: i32, %arg1: memref<128x1024xbf16, #tpu.memory_space<vmem>>, %arg2: memref<8x128xbf16, #tpu.memory_space<vmem>>, %arg3: memref<2x8x512xf32, #tpu.memory_space<vmem>>) attributes {dimension_semantics = [#tpu.dimension_semantics<arbitrary>], iteration_bounds = array<i64: 1>, scalar_prefetch = 0 : i64, scratch_operands = 0 : i64, tpu.core_type = #tpu.core_type<tc>, window_params = [{pipeline_mode = #tpu.pipeline_mode<synchronous>, transform_indices = @transform_0, window_bounds = array<i64: 128, 1024>}, {pipeline_mode = #tpu.pipeline_mode<synchronous>, transform_indices = @transform_1, window_bounds = array<i64: 8, 128>}, {pipeline_mode = #tpu.pipeline_mode<synchronous>, transform_indices = @transform_2, window_bounds = array<i64: 2, 8, 512>}]} {
    %c0 = arith.constant 0 : index
    %c0_0 = arith.constant 0 : index
    %0 = vector.load %arg2[%c0, %c0_0] : memref<8x128xbf16, #tpu.memory_space<vmem>>, vector<8x128xbf16>
    %c0_1 = arith.constant 0 : index
    %c0_2 = arith.constant 0 : index
    %1 = vector.load %arg1[%c0_1, %c0_2] : memref<128x1024xbf16, #tpu.memory_space<vmem>>, vector<128x1024xbf16>
    %cst = arith.constant dense<0.000000e+00> : vector<8x1024xf32>
    %2 = tpu.matmul %0, %1, %cst {dimension_numbers = #tpu.dot_dimension_numbers<[1], [0], [0], [1], [0, 0, 1, 1], [], []>} : vector<8x128xbf16>, vector<128x1024xbf16>, vector<8x1024xf32> -> vector<8x1024xf32>
    %3 = vector.extract_strided_slice %2 {offsets = [0, 0], sizes = [8, 512], strides = [1, 1]} : vector<8x1024xf32> to vector<8x512xf32>
    %cst_3 = arith.constant dense<0.000000e+00> : vector<8xf32>
    %4 = vector.multi_reduction <add>, %3, %cst_3 [1] : vector<8x512xf32> to vector<8xf32>
    %5 = vector.shape_cast %4 : vector<8xf32> to vector<8x1xf32>
    %6 = arith.mulf %3, %3 : vector<8x512xf32>
    %cst_4 = arith.constant dense<0.000000e+00> : vector<8xf32>
    %7 = vector.multi_reduction <add>, %6, %cst_4 [1] : vector<8x512xf32> to vector<8xf32>
    %8 = vector.shape_cast %7 : vector<8xf32> to vector<8x1xf32>
    %cst_5 = arith.constant 0.001953125 : f32
    %9 = vector.broadcast %cst_5 : f32 to vector<8x1xf32>
    %10 = arith.mulf %5, %9 : vector<8x1xf32>
    %cst_6 = arith.constant 0.001953125 : f32
    %11 = vector.broadcast %cst_6 : f32 to vector<8x1xf32>
    %12 = arith.mulf %8, %11 : vector<8x1xf32>
    %13 = arith.mulf %10, %10 : vector<8x1xf32>
    %14 = arith.subf %12, %13 : vector<8x1xf32>
    %cst_7 = arith.constant 0.000000e+00 : f32
    %15 = vector.broadcast %cst_7 : f32 to vector<8x1xf32>
    %16 = arith.maximumf %14, %15 : vector<8x1xf32>
    %cst_8 = arith.constant 9.99999997E-7 : f32
    %17 = vector.broadcast %cst_8 : f32 to vector<8x1xf32>
    %18 = arith.addf %16, %17 : vector<8x1xf32>
    %19 = math.rsqrt %18 : vector<8x1xf32>
    %20 = vector.broadcast %10 : vector<8x1xf32> to vector<8x512xf32>
    %21 = arith.subf %3, %20 : vector<8x512xf32>
    %22 = vector.broadcast %19 : vector<8x1xf32> to vector<8x512xf32>
    %23 = arith.mulf %21, %22 : vector<8x512xf32>
    %cst_9 = arith.constant 0.000000e+00 : f32
    %24 = vector.broadcast %cst_9 : f32 to vector<8x512xf32>
    %25 = arith.cmpf oge, %23, %24 : vector<8x512xf32>
    %cst_10 = arith.constant 2.000000e-01 : f32
    %26 = vector.broadcast %cst_10 : f32 to vector<8x512xf32>
    %27 = arith.mulf %26, %23 : vector<8x512xf32>
    %28 = arith.select %25, %23, %27 : vector<8x512xi1>, vector<8x512xf32>
    %c0_11 = arith.constant 0 : index
    %c0_12 = arith.constant 0 : index
    %c0_13 = arith.constant 0 : index
    %29 = vector.load %arg3[%c0_11, %c0_12, %c0_13] : memref<2x8x512xf32, #tpu.memory_space<vmem>>, vector<1x8x512xf32>
    %30 = vector.shape_cast %29 : vector<1x8x512xf32> to vector<8x512xf32>
    %31 = vector.shape_cast %28 : vector<8x512xf32> to vector<1x8x512xf32>
    tpu.vector_store %arg3[%c0_11, %c0_12, %c0_13], %31 {strides = array<i32>} : memref<2x8x512xf32, #tpu.memory_space<vmem>>, vector<1x8x512xf32>,
    %32 = vector.extract_strided_slice %2 {offsets = [0, 512], sizes = [8, 512], strides = [1, 1]} : vector<8x1024xf32> to vector<8x512xf32>
    %cst_14 = arith.constant dense<0.000000e+00> : vector<8xf32>
    %33 = vector.multi_reduction <add>, %32, %cst_14 [1] : vector<8x512xf32> to vector<8xf32>
    %34 = vector.shape_cast %33 : vector<8xf32> to vector<8x1xf32>
    %35 = arith.mulf %32, %32 : vector<8x512xf32>
    %cst_15 = arith.constant dense<0.000000e+00> : vector<8xf32>
    %36 = vector.multi_reduction <add>, %35, %cst_15 [1] : vector<8x512xf32> to vector<8xf32>
    %37 = vector.shape_cast %36 : vector<8xf32> to vector<8x1xf32>
    %cst_16 = arith.constant 0.001953125 : f32
    %38 = vector.broadcast %cst_16 : f32 to vector<8x1xf32>
    %39 = arith.mulf %34, %38 : vector<8x1xf32>
    %cst_17 = arith.constant 0.001953125 : f32
    %40 = vector.broadcast %cst_17 : f32 to vector<8x1xf32>
    %41 = arith.mulf %37, %40 : vector<8x1xf32>
    %42 = arith.mulf %39, %39 : vector<8x1xf32>
    %43 = arith.subf %41, %42 : vector<8x1xf32>
    %cst_18 = arith.constant 0.000000e+00 : f32
    %44 = vector.broadcast %cst_18 : f32 to vector<8x1xf32>
    %45 = arith.maximumf %43, %44 : vector<8x1xf32>
    %cst_19 = arith.constant 9.99999997E-7 : f32
    %46 = vector.broadcast %cst_19 : f32 to vector<8x1xf32>
    %47 = arith.addf %45, %46 : vector<8x1xf32>
    %48 = math.rsqrt %47 : vector<8x1xf32>
    %49 = vector.broadcast %39 : vector<8x1xf32> to vector<8x512xf32>
    %50 = arith.subf %32, %49 : vector<8x512xf32>
    %51 = vector.broadcast %48 : vector<8x1xf32> to vector<8x512xf32>
    %52 = arith.mulf %50, %51 : vector<8x512xf32>
    %cst_20 = arith.constant 0.000000e+00 : f32
    %53 = vector.broadcast %cst_20 : f32 to vector<8x512xf32>
    %54 = arith.cmpf oge, %52, %53 : vector<8x512xf32>
    %cst_21 = arith.constant 2.000000e-01 : f32
    %55 = vector.broadcast %cst_21 : f32 to vector<8x512xf32>
    %56 = arith.mulf %55, %52 : vector<8x512xf32>
    %57 = arith.select %54, %52, %56 : vector<8x512xi1>, vector<8x512xf32>
    %c1 = arith.constant 1 : index
    %c0_22 = arith.constant 0 : index
    %c0_23 = arith.constant 0 : index
    %58 = vector.load %arg3[%c1, %c0_22, %c0_23] : memref<2x8x512xf32, #tpu.memory_space<vmem>>, vector<1x8x512xf32>
    %59 = vector.shape_cast %58 : vector<1x8x512xf32> to vector<8x512xf32>
    %60 = vector.shape_cast %57 : vector<8x512xf32> to vector<1x8x512xf32>
    tpu.vector_store %arg3[%c1, %c0_22, %c0_23], %60 {strides = array<i32>} : memref<2x8x512xf32, #tpu.memory_space<vmem>>, vector<1x8x512xf32>,
    return
  }
  func.func @transform_0(%arg0: i32) -> (i32, i32) {
    %c0_i32 = arith.constant 0 : i32
    %c0_i32_0 = arith.constant 0 : i32
    %c0_i32_1 = arith.constant 0 : i32
    return %c0_i32, %c0_i32_0 : i32, i32
  }
  func.func @transform_1(%arg0: i32) -> (i32, i32) {
    %c0_i32 = arith.constant 0 : i32
    %c0_i32_0 = arith.constant 0 : i32
    %c0_i32_1 = arith.constant 0 : i32
    return %c0_i32, %c0_i32_0 : i32, i32
  }
  func.func @transform_2(%arg0: i32) -> (i32, i32, i32) {
    %c0_i32 = arith.constant 0 : i32
    %c0_i32_0 = arith.constant 0 : i32
    %c0_i32_1 = arith.constant 0 : i32
    %c0_i32_2 = arith.constant 0 : i32
    return %c0_i32, %c0_i32_0, %c0_i32_1 : i32, i32, i32
  }
}

</mosaic_0001>

<llo_original>
// kernel: conv_dil_block.2
$region0: #{conv_dil_block.2}
  #allocation0 [shape = 'u32[]', space=smem, size = 0x4, offset = 0x4, fixed_abs, tag = 'smem constant byte address 0x4 - core index']
  #allocation1 [shape = 'u32[72,128]{1,0:T(1,128)}', space=vmem, size = 0x9000, scoped, tag = 'internal scratch']
  #allocation2 [shape = 'u32[2048]{0}', space=vmem, size = 0x2000, scoped, tag = 'scoped memory for conv_dil_block.2']
  #allocation3 [shape = 'u32[2048]{0}', space=vmem, size = 0x2000, scoped, tag = 'scoped memory for conv_dil_block.2']
  #allocation4 [shape = 'u32[2048]{0}', space=vmem, size = 0x2000, scoped, tag = 'scoped memory for conv_dil_block.2']
  #allocation5 [shape = 'u32[2048]{0}', space=vmem, size = 0x2000, scoped, tag = 'scoped memory for conv_dil_block.2']
  #allocation6 [shape = 'u32[2048]{0}', space=vmem, size = 0x2000, scoped, tag = 'scoped memory for conv_dil_block.2']
  %s0 = inlined_call_operand.vmem [shape: bf16[8,128], index: 0, kind: input, shape index: {}]
  %s1 = inlined_call_operand.vmem [shape: bf16[108,1024], index: 1, kind: input, shape index: {}]
  %s2 = inlined_call_operand.<no memory space> [shape: bf16[], index: 2, kind: input, shape index: {}]
  %s3 = inlined_call_operand.vmem [shape: f32[2,8,512], index: 3, kind: output, shape index: {}]
  %s4 = sld [smem:[#allocation0]]
  $region18: #{conv_dil_block.2} parent=0
    _
  %s6 = ssub.s32 1, %s4
  %s7 = scalar_select 0, %s6, %s4
  %v8 = vstv %s2
  %v9 = vunpack.i.l.bf16 %v8
  %v11 = vunpack.i.h.bf16 %v8
  $region1: #{conv_dil_block.2} parent=0
    #allocation7 [shape = 'u8[262144]{0}', space=vmem, size = 0x40000, dematerialized = true, scoped, tag = 'FusionAdapter Buffer %fusion.1 = bf16[128,1024]{1,0:T(8,128)(2,1)} fusion(%param_1.2, %param_2), kind=kLoop, calls=%fused_computation.2.clone, metadata={op_name="jit(conv_dil_block)/concatenate" stack_frame_id=14}']
    // Predicated region
    $region2: #{conv_dil_block.2} parent=1 // pred_check
      _
    $region3: #{conv_dil_block.2} parent=1 // pred_check_branch
      %14 = sbr.rel (0) target = $region5
    $region4: #{conv_dil_block.2} parent=1 // pred_region
      _
    $region5: #{conv_dil_block.2} parent=1 // pred_fallthru
      _
    // Predicated region
    $region6: #{conv_dil_block.2} parent=1 // pred_check
      _
    $region7: #{conv_dil_block.2} parent=1 // pred_check_branch
      %16 = sbr.rel (0) target = $region9
    $region8: #{conv_dil_block.2} parent=1 // pred_region
      _
    $region9: #{conv_dil_block.2} parent=1 // pred_fallthru
      _
    %v17 = vld [vmem:[%s1] sm:$0xf]
    %v18 = vunpack.c.l.bf16 %v17
    %v19 = vunpack.c.h.bf16 %v17
    %v20 = vlaneseq
    %v21 = vshrl.u32 %v20, 7
    %vm23 = vcmp.lt.s32.totalorder %v21, 108
    %v24 = vsel %vm23, %v18, %v9
    %v25 = vpack.c.bf16 0.0, %v24
    %s27 = ssub.s32 16, 1
    %28 = vst [vmem:[#allocation7] sm:%s27] %v25
    %s29 = scalar_lea.vmem %s1, 4
    %v30 = vld [vmem:[%s29] sm:$0xf]
    %v31 = vunpack.c.l.bf16 %v30
    %v32 = vunpack.c.h.bf16 %v30
    %v33 = vlaneseq
    %v34 = vshrl.u32 %v33, 7
    %vm36 = vcmp.lt.s32.totalorder %v34, 108
    %v37 = vsel %vm36, %v31, %v9
    %s38 = scalar_lea.vmem [#allocation7], 4
    %v39 = vpack.c.bf16 0.0, %v37
    %s41 = ssub.s32 16, 1
    %42 = vst [vmem:[%s38] sm:%s41] %v39
    %s43 = scalar_lea.vmem %s1, 8
    %v44 = vld [vmem:[%s43] sm:$0xf]
    %v45 = vunpack.c.l.bf16 %v44
    %v46 = vunpack.c.h.bf16 %v44
    %v47 = vlaneseq
    %v48 = vshrl.u32 %v47, 7
    %vm50 = vcmp.lt.s32.totalorder %v48, 108
    %v51 = vsel %vm50, %v45, %v9
    %s52 = scalar_lea.vmem [#allocation7], 8
    %v53 = vpack.c.bf16 0.0, %v51
    %s55 = ssub.s32 16, 1
    %56 = vst [vmem:[%s52] sm:%s55] %v53
    %s57 = scalar_lea.vmem %s1, 12
    %v58 = vld [vmem:[%s57] sm:$0xf]
    %v59 = vunpack.c.l.bf16 %v58
    %v60 = vunpack.c.h.bf16 %v58
    %v61 = vlaneseq
    %v62 = vshrl.u32 %v61, 7
    %vm64 = vcmp.lt.s32.totalorder %v62, 108
    %v65 = vsel %vm64, %v59, %v9
    %s66 = scalar_lea.vmem [#allocation7], 12
    %v67 = vpack.c.bf16 0.0, %v65
    %s69 = ssub.s32 16, 1
    %70 = vst [vmem:[%s66] sm:%s69] %v67
    %s71 = scalar_lea.vmem %s1, 16
    %v72 = vld [vmem:[%s71] sm:$0xf]
    %v73 = vunpack.c.l.bf16 %v72
    %v74 = vunpack.c.h.bf16 %v72
    %v75 = vlaneseq
    %v76 = vshrl.u32 %v75, 7
    %vm78 = vcmp.lt.s32.totalorder %v76, 108
    %v79 = vsel %vm78, %v73, %v9
    %s80 = scalar_lea.vmem [#allocation7], 16
    %v81 = vpack.c.bf16 0.0, %v79
    %s83 = ssub.s32 16, 1
    %84 = vst [vmem:[%s80] sm:%s83] %v81
    %s85 = scalar_lea.vmem %s1, 20
    %v86 = vld [vmem:[%s85] sm:$0xf]
    %v87 = vunpack.c.l.bf16 %v86
    %v88 = vunpack.c.h.bf16 %v86
    %v89 = vlaneseq
    %v90 = vshrl.u32 %v89, 7
    %vm92 = vcmp.lt.s32.totalorder %v90, 108
    %v93 = vsel %vm92, %v87, %v9
    %s94 = scalar_lea.vmem [#allocation7], 20
    %v95 = vpack.c.bf16 0.0, %v93
    %s97 = ssub.s32 16, 1
    %98 = vst [vmem:[%s94] sm:%s97] %v95
    %s99 = scalar_lea.vmem %s1, 24
    %v100 = vld [vmem:[%s99] sm:$0xf]
    %v101 = vunpack.c.l.bf16 %v100
    %v102 = vunpack.c.h.bf16 %v100
    %v103 = vlaneseq
    %v104 = vshrl.u32 %v103, 7
    %vm106 = vcmp.lt.s32.totalorder %v104, 108
    %v107 = vsel %vm106, %v101, %v9
    %s108 = scalar_lea.vmem [#allocation7], 24
    %v109 = vpack.c.bf16 0.0, %v107
    %s111 = ssub.s32 16, 1
    %112 = vst [vmem:[%s108] sm:%s111] %v109
    %s113 = scalar_lea.vmem %s1, 28
    %v114 = vld [vmem:[%s113] sm:$0xf]
    %v115 = vunpack.c.l.bf16 %v114
    %v116 = vunpack.c.h.bf16 %v114
    %v117 = vlaneseq
    %v118 = vshrl.u32 %v117, 7
    %vm120 = vcmp.lt.s32.totalorder %v118, 108
    %v121 = vsel %vm120, %v115, %v9
    %s122 = scalar_lea.vmem [#allocation7], 28
    %v123 = vpack.c.bf16 0.0, %v121
    %s125 = ssub.s32 16, 1
    %126 = vst [vmem:[%s122] sm:%s125] %v123
    %s127 = scalar_lea.vmem %s1, 32
    %v128 = vld [vmem:[%s127] sm:$0xf]
    %v129 = vunpack.c.l.bf16 %v128
    %v130 = vunpack.c.h.bf16 %v128
    %v131 = vlaneseq
    %v132 = vshrl.u32 %v131, 7
    %v133 = vadd.s32 %v132, 8
    %vm134 = vcmp.lt.s32.totalorder %v133, 108
    %v135 = vsel %vm134, %v129, %v9
    %s136 = scalar_lea.vmem [#allocation7], 32
    %v137 = vpack.c.bf16 0.0, %v135
    %s139 = ssub.s32 16, 1
    %140 = vst [vmem:[%s136] sm:%s139] %v137
    %s141 = scalar_lea.vmem %s1, 36
    %v142 = vld [vmem:[%s141] sm:$0xf]
    %v143 = vunpack.c.l.bf16 %v142
    %v144 = vunpack.c.h.bf16 %v142
    %v145 = vlaneseq
    %v146 = vshrl.u32 %v145, 7
    %v147 = vadd.s32 %v146, 8
    %vm148 = vcmp.lt.s32.totalorder %v147, 108
    %v149 = vsel %vm148, %v143, %v9
    %s150 = scalar_lea.vmem [#allocation7], 36
    %v151 = vpack.c.bf16 0.0, %v149
    %s153 = ssub.s32 16, 1
    %154 = vst [vmem:[%s150] sm:%s153] %v151
    %s155 = scalar_lea.vmem %s1, 40
    %v156 = vld [vmem:[%s155] sm:$0xf]
    %v157 = vunpack.c.l.bf16 %v156
    %v158 = vunpack.c.h.bf16 %v156
    %v159 = vlaneseq
    %v160 = vshrl.u32 %v159, 7
    %v161 = vadd.s32 %v160, 8
    %vm162 = vcmp.lt.s32.totalorder %v161, 108
    %v163 = vsel %vm162, %v157, %v9
    %s164 = scalar_lea.vmem [#allocation7], 40
    %v165 = vpack.c.bf16 0.0, %v163
    %s167 = ssub.s32 16, 1
    %168 = vst [vmem:[%s164] sm:%s167] %v165
    %s169 = scalar_lea.vmem %s1, 44
    %v170 = vld [vmem:[%s169] sm:$0xf]
    %v171 = vunpack.c.l.bf16 %v170
    %v172 = vunpack.c.h.bf16 %v170
    %v173 = vlaneseq
    %v174 = vshrl.u32 %v173, 7
    %v175 = vadd.s32 %v174, 8
    %vm176 = vcmp.lt.s32.totalorder %v175, 108
    %v177 = vsel %vm176, %v171, %v9
    %s178 = scalar_lea.vmem [#allocation7], 44
    %v179 = vpack.c.bf16 0.0, %v177
    %s181 = ssub.s32 16, 1
    %182 = vst [vmem:[%s178] sm:%s181] %v179
    %s183 = scalar_lea.vmem %s1, 48
    %v184 = vld [vmem:[%s183] sm:$0xf]
    %v185 = vunpack.c.l.bf16 %v184
    %v186 = vunpack.c.h.bf16 %v184
    %v187 = vlaneseq
    %v188 = vshrl.u32 %v187, 7
    %v189 = vadd.s32 %v188, 8
    %vm190 = vcmp.lt.s32.totalorder %v189, 108
    %v191 = vsel %vm190, %v185, %v9
    %s192 = scalar_lea.vmem [#allocation7], 48
    %v193 = vpack.c.bf16 0.0, %v191
    %s195 = ssub.s32 16, 1
    %196 = vst [vmem:[%s192] sm:%s195] %v193
    %s197 = scalar_lea.vmem %s1, 52
    %v198 = vld [vmem:[%s197] sm:$0xf]
    %v199 = vunpack.c.l.bf16 %v198
    %v200 = vunpack.c.h.bf16 %v198
    %v201 = vlaneseq
    %v202 = vshrl.u32 %v201, 7
    %v203 = vadd.s32 %v202, 8
    %vm204 = vcmp.lt.s32.totalorder %v203, 108
    %v205 = vsel %vm204, %v199, %v9
    %s206 = scalar_lea.vmem [#allocation7], 52
    %v207 = vpack.c.bf16 0.0, %v205
    %s209 = ssub.s32 16, 1
    %210 = vst [vmem:[%s206] sm:%s209] %v207
    %s211 = scalar_lea.vmem %s1, 56
    %v212 = vld [vmem:[%s211] sm:$0xf]
    %v213 = vunpack.c.l.bf16 %v212
    %v214 = vunpack.c.h.bf16 %v212
    %v215 = vlaneseq
    %v216 = vshrl.u32 %v215, 7
    %v217 = vadd.s32 %v216, 8
    %vm218 = vcmp.lt.s32.totalorder %v217, 108
    %v219 = vsel %vm218, %v213, %v9
    %s220 = scalar_lea.vmem [#allocation7], 56
    %v221 = vpack.c.bf16 0.0, %v219
    %s223 = ssub.s32 16, 1
    %224 = vst [vmem:[%s220] sm:%s223] %v221
    %s225 = scalar_lea.vmem %s1, 60
    %v226 = vld [vmem:[%s225] sm:$0xf]
    %v227 = vunpack.c.l.bf16 %v226
    %v228 = vunpack.c.h.bf16 %v226
    %v229 = vlaneseq
    %v230 = vshrl.u32 %v229, 7
    %v231 = vadd.s32 %v230, 8
    %vm232 = vcmp.lt.s32.totalorder %v231, 108
    %v233 = vsel %vm232, %v227, %v9
    %s234 = scalar_lea.vmem [#allocation7], 60
    %v235 = vpack.c.bf16 0.0, %v233
    %s237 = ssub.s32 16, 1
    %238 = vst [vmem:[%s234] sm:%s237] %v235
    %s239 = scalar_lea.vmem %s1, 64
    %v240 = vld [vmem:[%s239] sm:$0xf]
    %v241 = vunpack.c.l.bf16 %v240
    %v242 = vunpack.c.h.bf16 %v240
    %v243 = vlaneseq
    %v244 = vshrl.u32 %v243, 7
    %v245 = vadd.s32 %v244, 16
    %vm246 = vcmp.lt.s32.totalorder %v245, 108
    %v247 = vsel %vm246, %v241, %v9
    %s248 = scalar_lea.vmem [#allocation7], 64
    %v249 = vpack.c.bf16 0.0, %v247
    %s251 = ssub.s32 16, 1
    %252 = vst [vmem:[%s248] sm:%s251] %v249
    %s253 = scalar_lea.vmem %s1, 68
    %v254 = vld [vmem:[%s253] sm:$0xf]
    %v255 = vunpack.c.l.bf16 %v254
    %v256 = vunpack.c.h.bf16 %v254
    %v257 = vlaneseq
    %v258 = vshrl.u32 %v257, 7
    %v259 = vadd.s32 %v258, 16
    %vm260 = vcmp.lt.s32.totalorder %v259, 108
    %v261 = vsel %vm260, %v255, %v9
    %s262 = scalar_lea.vmem [#allocation7], 68
    %v263 = vpack.c.bf16 0.0, %v261
    %s265 = ssub.s32 16, 1
    %266 = vst [vmem:[%s262] sm:%s265] %v263
    %s267 = scalar_lea.vmem %s1, 72
    %v268 = vld [vmem:[%s267] sm:$0xf]
    %v269 = vunpack.c.l.bf16 %v268
    %v270 = vunpack.c.h.bf16 %v268
    %v271 = vlaneseq
    %v272 = vshrl.u32 %v271, 7
    %v273 = vadd.s32 %v272, 16
    %vm274 = vcmp.lt.s32.totalorder %v273, 108
    %v275 = vsel %vm274, %v269, %v9
    %s276 = scalar_lea.vmem [#allocation7], 72
    %v277 = vpack.c.bf16 0.0, %v275
    %s279 = ssub.s32 16, 1
    %280 = vst [vmem:[%s276] sm:%s279] %v277
    %s281 = scalar_lea.vmem %s1, 76
    %v282 = vld [vmem:[%s281] sm:$0xf]
    %v283 = vunpack.c.l.bf16 %v282
    %v284 = vunpack.c.h.bf16 %v282
    %v285 = vlaneseq
    %v286 = vshrl.u32 %v285, 7
    %v287 = vadd.s32 %v286, 16
    %vm288 = vcmp.lt.s32.totalorder %v287, 108
    %v289 = vsel %vm288, %v283, %v9
    %s290 = scalar_lea.vmem [#allocation7], 76
    %v291 = vpack.c.bf16 0.0, %v289
    %s293 = ssub.s32 16, 1
    %294 = vst [vmem:[%s290] sm:%s293] %v291
    %s295 = scalar_lea.vmem %s1, 80
    %v296 = vld [vmem:[%s295] sm:$0xf]
    %v297 = vunpack.c.l.bf16 %v296
    %v298 = vunpack.c.h.bf16 %v296
    %v299 = vlaneseq
    %v300 = vshrl.u32 %v299, 7
    %v301 = vadd.s32 %v300, 16
    %vm302 = vcmp.lt.s32.totalorder %v301, 108
    %v303 = vsel %vm302, %v297, %v9
    %s304 = scalar_lea.vmem [#allocation7], 80
    %v305 = vpack.c.bf16 0.0, %v303
    %s307 = ssub.s32 16, 1
    %308 = vst [vmem:[%s304] sm:%s307] %v305
    %s309 = scalar_lea.vmem %s1, 84
    %v310 = vld [vmem:[%s309] sm:$0xf]
    %v311 = vunpack.c.l.bf16 %v310
    %v312 = vunpack.c.h.bf16 %v310
    %v313 = vlaneseq
    %v314 = vshrl.u32 %v313, 7
    %v315 = vadd.s32 %v314, 16
    %vm316 = vcmp.lt.s32.totalorder %v315, 108
    %v317 = vsel %vm316, %v311, %v9
    %s318 = scalar_lea.vmem [#allocation7], 84
    %v319 = vpack.c.bf16 0.0, %v317
    %s321 = ssub.s32 16, 1
    %322 = vst [vmem:[%s318] sm:%s321] %v319
    %s323 = scalar_lea.vmem %s1, 88
    %v324 = vld [vmem:[%s323] sm:$0xf]
    %v325 = vunpack.c.l.bf16 %v324
    %v326 = vunpack.c.h.bf16 %v324
    %v327 = vlaneseq
    %v328 = vshrl.u32 %v327, 7
    %v329 = vadd.s32 %v328, 16
    %vm330 = vcmp.lt.s32.totalorder %v329, 108
    %v331 = vsel %vm330, %v325, %v9
    %s332 = scalar_lea.vmem [#allocation7], 88
    %v333 = vpack.c.bf16 0.0, %v331
    %s335 = ssub.s32 16, 1
    %336 = vst [vmem:[%s332] sm:%s335] %v333
    %s337 = scalar_lea.vmem %s1, 92
    %v338 = vld [vmem:[%s337] sm:$0xf]
    %v339 = vunpack.c.l.bf16 %v338
    %v340 = vunpack.c.h.bf16 %v338
    %v341 = vlaneseq
    %v342 = vshrl.u32 %v341, 7
    %v343 = vadd.s32 %v342, 16
    %vm344 = vcmp.lt.s32.totalorder %v343, 108
    %v345 = vsel %vm344, %v339, %v9
    %s346 = scalar_lea.vmem [#allocation7], 92
    %v347 = vpack.c.bf16 0.0, %v345
    %s349 = ssub.s32 16, 1
    %350 = vst [vmem:[%s346] sm:%s349] %v347
    %s351 = scalar_lea.vmem %s1, 96
    %v352 = vld [vmem:[%s351] sm:$0xf]
    %v353 = vunpack.c.l.bf16 %v352
    %v354 = vunpack.c.h.bf16 %v352
    %v355 = vlaneseq
    %v356 = vshrl.u32 %v355, 7
    %v357 = vadd.s32 %v356, 24
    %vm358 = vcmp.lt.s32.totalorder %v357, 108
    %v359 = vsel %vm358, %v353, %v9
    %s360 = scalar_lea.vmem [#allocation7], 96
    %v361 = vpack.c.bf16 0.0, %v359
    %s363 = ssub.s32 16, 1
    %364 = vst [vmem:[%s360] sm:%s363] %v361
    %s365 = scalar_lea.vmem %s1, 100
    %v366 = vld [vmem:[%s365] sm:$0xf]
    %v367 = vunpack.c.l.bf16 %v366
    %v368 = vunpack.c.h.bf16 %v366
    %v369 = vlaneseq
    %v370 = vshrl.u32 %v369, 7
    %v371 = vadd.s32 %v370, 24
    %vm372 = vcmp.lt.s32.totalorder %v371, 108
    %v373 = vsel %vm372, %v367, %v9
    %s374 = scalar_lea.vmem [#allocation7], 100
    %v375 = vpack.c.bf16 0.0, %v373
    %s377 = ssub.s32 16, 1
    %378 = vst [vmem:[%s374] sm:%s377] %v375
    %s379 = scalar_lea.vmem %s1, 104
    %v380 = vld [vmem:[%s379] sm:$0xf]
    %v381 = vunpack.c.l.bf16 %v380
    %v382 = vunpack.c.h.bf16 %v380
    %v383 = vlaneseq
    %v384 = vshrl.u32 %v383, 7
    %v385 = vadd.s32 %v384, 24
    %vm386 = vcmp.lt.s32.totalorder %v385, 108
    %v387 = vsel %vm386, %v381, %v9
    %s388 = scalar_lea.vmem [#allocation7], 104
    %v389 = vpack.c.bf16 0.0, %v387
    %s391 = ssub.s32 16, 1
    %392 = vst [vmem:[%s388] sm:%s391] %v389
    %s393 = scalar_lea.vmem %s1, 108
    %v394 = vld [vmem:[%s393] sm:$0xf]
    %v395 = vunpack.c.l.bf16 %v394
    %v396 = vunpack.c.h.bf16 %v394
    %v397 = vlaneseq
    %v398 = vshrl.u32 %v397, 7
    %v399 = vadd.s32 %v398, 24
    %vm400 = vcmp.lt.s32.totalorder %v399, 108
    %v401 = vsel %vm400, %v395, %v9
    %s402 = scalar_lea.vmem [#allocation7], 108
    %v403 = vpack.c.bf16 0.0, %v401
    %s405 = ssub.s32 16, 1
    %406 = vst [vmem:[%s402] sm:%s405] %v403
    %s407 = scalar_lea.vmem %s1, 112
    %v408 = vld [vmem:[%s407] sm:$0xf]
    %v409 = vunpack.c.l.bf16 %v408
    %v410 = vunpack.c.h.bf16 %v408
    %v411 = vlaneseq
    %v412 = vshrl.u32 %v411, 7
    %v413 = vadd.s32 %v412, 24
    %vm414 = vcmp.lt.s32.totalorder %v413, 108
    %v415 = vsel %vm414, %v409, %v9
    %s416 = scalar_lea.vmem [#allocation7], 112
    %v417 = vpack.c.bf16 0.0, %v415
    %s419 = ssub.s32 16, 1
    %420 = vst [vmem:[%s416] sm:%s419] %v417
    %s421 = scalar_lea.vmem %s1, 116
    %v422 = vld [vmem:[%s421] sm:$0xf]
    %v423 = vunpack.c.l.bf16 %v422
    %v424 = vunpack.c.h.bf16 %v422
    %v425 = vlaneseq
    %v426 = vshrl.u32 %v425, 7
    %v427 = vadd.s32 %v426, 24
    %vm428 = vcmp.lt.s32.totalorder %v427, 108
    %v429 = vsel %vm428, %v423, %v9
    %s430 = scalar_lea.vmem [#allocation7], 116
    %v431 = vpack.c.bf16 0.0, %v429
    %s433 = ssub.s32 16, 1
    %434 = vst [vmem:[%s430] sm:%s433] %v431
    %s435 = scalar_lea.vmem %s1, 120
    %v436 = vld [vmem:[%s435] sm:$0xf]
    %v437 = vunpack.c.l.bf16 %v436
    %v438 = vunpack.c.h.bf16 %v436
    %v439 = vlaneseq
    %v440 = vshrl.u32 %v439, 7
    %v441 = vadd.s32 %v440, 24
    %vm442 = vcmp.lt.s32.totalorder %v441, 108
    %v443 = vsel %vm442, %v437, %v9
    %s444 = scalar_lea.vmem [#allocation7], 120
    %v445 = vpack.c.bf16 0.0, %v443
    %s447 = ssub.s32 16, 1
    %448 = vst [vmem:[%s444] sm:%s447] %v445
    %s449 = scalar_lea.vmem %s1, 124
    %v450 = vld [vmem:[%s449] sm:$0xf]
    %v451 = vunpack.c.l.bf16 %v450
    %v452 = vunpack.c.h.bf16 %v450
    %v453 = vlaneseq
    %v454 = vshrl.u32 %v453, 7
    %v455 = vadd.s32 %v454, 24
    %vm456 = vcmp.lt.s32.totalorder %v455, 108
    %v457 = vsel %vm456, %v451, %v9
    %s458 = scalar_lea.vmem [#allocation7], 124
    %v459 = vpack.c.bf16 0.0, %v457
    %s461 = ssub.s32 16, 1
    %462 = vst [vmem:[%s458] sm:%s461] %v459
    %s463 = scalar_lea.vmem %s1, 128
    %v464 = vld [vmem:[%s463] sm:$0xf]
    %v465 = vunpack.c.l.bf16 %v464
    %v466 = vunpack.c.h.bf16 %v464
    %v467 = vlaneseq
    %v468 = vshrl.u32 %v467, 7
    %v469 = vadd.s32 %v468, 32
    %vm470 = vcmp.lt.s32.totalorder %v469, 108
    %v471 = vsel %vm470, %v465, %v9
    %s472 = scalar_lea.vmem [#allocation7], 128
    %v473 = vpack.c.bf16 0.0, %v471
    %s475 = ssub.s32 16, 1
    %476 = vst [vmem:[%s472] sm:%s475] %v473
    %s477 = scalar_lea.vmem %s1, 132
    %v478 = vld [vmem:[%s477] sm:$0xf]
    %v479 = vunpack.c.l.bf16 %v478
    %v480 = vunpack.c.h.bf16 %v478
    %v481 = vlaneseq
    %v482 = vshrl.u32 %v481, 7
    %v483 = vadd.s32 %v482, 32
    %vm484 = vcmp.lt.s32.totalorder %v483, 108
    %v485 = vsel %vm484, %v479, %v9
    %s486 = scalar_lea.vmem [#allocation7], 132
    %v487 = vpack.c.bf16 0.0, %v485
    %s489 = ssub.s32 16, 1
    %490 = vst [vmem:[%s486] sm:%s489] %v487
    %s491 = scalar_lea.vmem %s1, 136
    %v492 = vld [vmem:[%s491] sm:$0xf]
    %v493 = vunpack.c.l.bf16 %v492
    %v494 = vunpack.c.h.bf16 %v492
    %v495 = vlaneseq
    %v496 = vshrl.u32 %v495, 7
    %v497 = vadd.s32 %v496, 32
    %vm498 = vcmp.lt.s32.totalorder %v497, 108
    %v499 = vsel %vm498, %v493, %v9
    %s500 = scalar_lea.vmem [#allocation7], 136
    %v501 = vpack.c.bf16 0.0, %v499
    %s503 = ssub.s32 16, 1
    %504 = vst [vmem:[%s500] sm:%s503] %v501
    %s505 = scalar_lea.vmem %s1, 140
    %v506 = vld [vmem:[%s505] sm:$0xf]
    %v507 = vunpack.c.l.bf16 %v506
    %v508 = vunpack.c.h.bf16 %v506
    %v509 = vlaneseq
    %v510 = vshrl.u32 %v509, 7
    %v511 = vadd.s32 %v510, 32
    %vm512 = vcmp.lt.s32.totalorder %v511, 108
    %v513 = vsel %vm512, %v507, %v9
    %s514 = scalar_lea.vmem [#allocation7], 140
    %v515 = vpack.c.bf16 0.0, %v513
    %s517 = ssub.s32 16, 1
    %518 = vst [vmem:[%s514] sm:%s517] %v515
    %s519 = scalar_lea.vmem %s1, 144
    %v520 = vld [vmem:[%s519] sm:$0xf]
    %v521 = vunpack.c.l.bf16 %v520
    %v522 = vunpack.c.h.bf16 %v520
    %v523 = vlaneseq
    %v524 = vshrl.u32 %v523, 7
    %v525 = vadd.s32 %v524, 32
    %vm526 = vcmp.lt.s32.totalorder %v525, 108
    %v527 = vsel %vm526, %v521, %v9
    %s528 = scalar_lea.vmem [#allocation7], 144
    %v529 = vpack.c.bf16 0.0, %v527
    %s531 = ssub.s32 16, 1
    %532 = vst [vmem:[%s528] sm:%s531] %v529
    %s533 = scalar_lea.vmem %s1, 148
    %v534 = vld [vmem:[%s533] sm:$0xf]
    %v535 = vunpack.c.l.bf16 %v534
    %v536 = vunpack.c.h.bf16 %v534
    %v537 = vlaneseq
    %v538 = vshrl.u32 %v537, 7
    %v539 = vadd.s32 %v538, 32
    %vm540 = vcmp.lt.s32.totalorder %v539, 108
    %v541 = vsel %vm540, %v535, %v9
    %s542 = scalar_lea.vmem [#allocation7], 148
    %v543 = vpack.c.bf16 0.0, %v541
    %s545 = ssub.s32 16, 1
    %546 = vst [vmem:[%s542] sm:%s545] %v543
    %s547 = scalar_lea.vmem %s1, 152
    %v548 = vld [vmem:[%s547] sm:$0xf]
    %v549 = vunpack.c.l.bf16 %v548
    %v550 = vunpack.c.h.bf16 %v548
    %v551 = vlaneseq
    %v552 = vshrl.u32 %v551, 7
    %v553 = vadd.s32 %v552, 32
    %vm554 = vcmp.lt.s32.totalorder %v553, 108
    %v555 = vsel %vm554, %v549, %v9
    %s556 = scalar_lea.vmem [#allocation7], 152
    %v557 = vpack.c.bf16 0.0, %v555
    %s559 = ssub.s32 16, 1
    %560 = vst [vmem:[%s556] sm:%s559] %v557
    %s561 = scalar_lea.vmem %s1, 156
    %v562 = vld [vmem:[%s561] sm:$0xf]
    %v563 = vunpack.c.l.bf16 %v562
    %v564 = vunpack.c.h.bf16 %v562
    %v565 = vlaneseq
    %v566 = vshrl.u32 %v565, 7
    %v567 = vadd.s32 %v566, 32
    %vm568 = vcmp.lt.s32.totalorder %v567, 108
    %v569 = vsel %vm568, %v563, %v9
    %s570 = scalar_lea.vmem [#allocation7], 156
    %v571 = vpack.c.bf16 0.0, %v569
    %s573 = ssub.s32 16, 1
    %574 = vst [vmem:[%s570] sm:%s573] %v571
    %s575 = scalar_lea.vmem %s1, 160
    %v576 = vld [vmem:[%s575] sm:$0xf]
    %v577 = vunpack.c.l.bf16 %v576
    %v578 = vunpack.c.h.bf16 %v576
    %v579 = vlaneseq
    %v580 = vshrl.u32 %v579, 7
    %v581 = vadd.s32 %v580, 40
    %vm582 = vcmp.lt.s32.totalorder %v581, 108
    %v583 = vsel %vm582, %v577, %v9
    %s584 = scalar_lea.vmem [#allocation7], 160
    %v585 = vpack.c.bf16 0.0, %v583
    %s587 = ssub.s32 16, 1
    %588 = vst [vmem:[%s584] sm:%s587] %v585
    %s589 = scalar_lea.vmem %s1, 164
    %v590 = vld [vmem:[%s589] sm:$0xf]
    %v591 = vunpack.c.l.bf16 %v590
    %v592 = vunpack.c.h.bf16 %v590
    %v593 = vlaneseq
    %v594 = vshrl.u32 %v593, 7
    %v595 = vadd.s32 %v594, 40
    %vm596 = vcmp.lt.s32.totalorder %v595, 108
    %v597 = vsel %vm596, %v591, %v9
    %s598 = scalar_lea.vmem [#allocation7], 164
    %v599 = vpack.c.bf16 0.0, %v597
    %s601 = ssub.s32 16, 1
    %602 = vst [vmem:[%s598] sm:%s601] %v599
    %s603 = scalar_lea.vmem %s1, 168
    %v604 = vld [vmem:[%s603] sm:$0xf]
    %v605 = vunpack.c.l.bf16 %v604
    %v606 = vunpack.c.h.bf16 %v604
    %v607 = vlaneseq
    %v608 = vshrl.u32 %v607, 7
    %v609 = vadd.s32 %v608, 40
    %vm610 = vcmp.lt.s32.totalorder %v609, 108
    %v611 = vsel %vm610, %v605, %v9
    %s612 = scalar_lea.vmem [#allocation7], 168
    %v613 = vpack.c.bf16 0.0, %v611
    %s615 = ssub.s32 16, 1
    %616 = vst [vmem:[%s612] sm:%s615] %v613
    %s617 = scalar_lea.vmem %s1, 172
    %v618 = vld [vmem:[%s617] sm:$0xf]
    %v619 = vunpack.c.l.bf16 %v618
    %v620 = vunpack.c.h.bf16 %v618
    %v621 = vlaneseq
    %v622 = vshrl.u32 %v621, 7
    %v623 = vadd.s32 %v622, 40
    %vm624 = vcmp.lt.s32.totalorder %v623, 108
    %v625 = vsel %vm624, %v619, %v9
    %s626 = scalar_lea.vmem [#allocation7], 172
    %v627 = vpack.c.bf16 0.0, %v625
    %s629 = ssub.s32 16, 1
    %630 = vst [vmem:[%s626] sm:%s629] %v627
    %s631 = scalar_lea.vmem %s1, 176
    %v632 = vld [vmem:[%s631] sm:$0xf]
    %v633 = vunpack.c.l.bf16 %v632
    %v634 = vunpack.c.h.bf16 %v632
    %v635 = vlaneseq
    %v636 = vshrl.u32 %v635, 7
    %v637 = vadd.s32 %v636, 40
    %vm638 = vcmp.lt.s32.totalorder %v637, 108
    %v639 = vsel %vm638, %v633, %v9
    %s640 = scalar_lea.vmem [#allocation7], 176
    %v641 = vpack.c.bf16 0.0, %v639
    %s643 = ssub.s32 16, 1
    %644 = vst [vmem:[%s640] sm:%s643] %v641
    %s645 = scalar_lea.vmem %s1, 180
    %v646 = vld [vmem:[%s645] sm:$0xf]
    %v647 = vunpack.c.l.bf16 %v646
    %v648 = vunpack.c.h.bf16 %v646
    %v649 = vlaneseq
    %v650 = vshrl.u32 %v649, 7
    %v651 = vadd.s32 %v650, 40
    %vm652 = vcmp.lt.s32.totalorder %v651, 108
    %v653 = vsel %vm652, %v647, %v9
    %s654 = scalar_lea.vmem [#allocation7], 180
    %v655 = vpack.c.bf16 0.0, %v653
    %s657 = ssub.s32 16, 1
    %658 = vst [vmem:[%s654] sm:%s657] %v655
    %s659 = scalar_lea.vmem %s1, 184
    %v660 = vld [vmem:[%s659] sm:$0xf]
    %v661 = vunpack.c.l.bf16 %v660
    %v662 = vunpack.c.h.bf16 %v660
    %v663 = vlaneseq
    %v664 = vshrl.u32 %v663, 7
    %v665 = vadd.s32 %v664, 40
    %vm666 = vcmp.lt.s32.totalorder %v665, 108
    %v667 = vsel %vm666, %v661, %v9
    %s668 = scalar_lea.vmem [#allocation7], 184
    %v669 = vpack.c.bf16 0.0, %v667
    %s671 = ssub.s32 16, 1
    %672 = vst [vmem:[%s668] sm:%s671] %v669
    %s673 = scalar_lea.vmem %s1, 188
    %v674 = vld [vmem:[%s673] sm:$0xf]
    %v675 = vunpack.c.l.bf16 %v674
    %v676 = vunpack.c.h.bf16 %v674
    %v677 = vlaneseq
    %v678 = vshrl.u32 %v677, 7
    %v679 = vadd.s32 %v678, 40
    %vm680 = vcmp.lt.s32.totalorder %v679, 108
    %v681 = vsel %vm680, %v675, %v9
    %s682 = scalar_lea.vmem [#allocation7], 188
    %v683 = vpack.c.bf16 0.0, %v681
    %s685 = ssub.s32 16, 1
    %686 = vst [vmem:[%s682] sm:%s685] %v683
    %s687 = scalar_lea.vmem %s1, 192
    %v688 = vld [vmem:[%s687] sm:$0xf]
    %v689 = vunpack.c.l.bf16 %v688
    %v690 = vunpack.c.h.bf16 %v688
    %v691 = vlaneseq
    %v692 = vshrl.u32 %v691, 7
    %v693 = vadd.s32 %v692, 48
    %vm694 = vcmp.lt.s32.totalorder %v693, 108
    %v695 = vsel %vm694, %v689, %v9
    %s696 = scalar_lea.vmem [#allocation7], 192
    %v697 = vpack.c.bf16 0.0, %v695
    %s699 = ssub.s32 16, 1
    %700 = vst [vmem:[%s696] sm:%s699] %v697
    %s701 = scalar_lea.vmem %s1, 196
    %v702 = vld [vmem:[%s701] sm:$0xf]
    %v703 = vunpack.c.l.bf16 %v702
    %v704 = vunpack.c.h.bf16 %v702
    %v705 = vlaneseq
    %v706 = vshrl.u32 %v705, 7
    %v707 = vadd.s32 %v706, 48
    %vm708 = vcmp.lt.s32.totalorder %v707, 108
    %v709 = vsel %vm708, %v703, %v9
    %s710 = scalar_lea.vmem [#allocation7], 196
    %v711 = vpack.c.bf16 0.0, %v709
    %s713 = ssub.s32 16, 1
    %714 = vst [vmem:[%s710] sm:%s713] %v711
    %s715 = scalar_lea.vmem %s1, 200
    %v716 = vld [vmem:[%s715] sm:$0xf]
    %v717 = vunpack.c.l.bf16 %v716
    %v718 = vunpack.c.h.bf16 %v716
    %v719 = vlaneseq
    %v720 = vshrl.u32 %v719, 7
    %v721 = vadd.s32 %v720, 48
    %vm722 = vcmp.lt.s32.totalorder %v721, 108
    %v723 = vsel %vm722, %v717, %v9
    %s724 = scalar_lea.vmem [#allocation7], 200
    %v725 = vpack.c.bf16 0.0, %v723
    %s727 = ssub.s32 16, 1
    %728 = vst [vmem:[%s724] sm:%s727] %v725
    %s729 = scalar_lea.vmem %s1, 204
    %v730 = vld [vmem:[%s729] sm:$0xf]
    %v731 = vunpack.c.l.bf16 %v730
    %v732 = vunpack.c.h.bf16 %v730
    %v733 = vlaneseq
    %v734 = vshrl.u32 %v733, 7
    %v735 = vadd.s32 %v734, 48
    %vm736 = vcmp.lt.s32.totalorder %v735, 108
    %v737 = vsel %vm736, %v731, %v9
    %s738 = scalar_lea.vmem [#allocation7], 204
    %v739 = vpack.c.bf16 0.0, %v737
    %s741 = ssub.s32 16, 1
    %742 = vst [vmem:[%s738] sm:%s741] %v739
    %s743 = scalar_lea.vmem %s1, 208
    %v744 = vld [vmem:[%s743] sm:$0xf]
    %v745 = vunpack.c.l.bf16 %v744
    %v746 = vunpack.c.h.bf16 %v744
    %v747 = vlaneseq
    %v748 = vshrl.u32 %v747, 7
    %v749 = vadd.s32 %v748, 48
    %vm750 = vcmp.lt.s32.totalorder %v749, 108
    %v751 = vsel %vm750, %v745, %v9
    %s752 = scalar_lea.vmem [#allocation7], 208
    %v753 = vpack.c.bf16 0.0, %v751
    %s755 = ssub.s32 16, 1
    %756 = vst [vmem:[%s752] sm:%s755] %v753
    %s757 = scalar_lea.vmem %s1, 212
    %v758 = vld [vmem:[%s757] sm:$0xf]
    %v759 = vunpack.c.l.bf16 %v758
    %v760 = vunpack.c.h.bf16 %v758
    %v761 = vlaneseq
    %v762 = vshrl.u32 %v761, 7
    %v763 = vadd.s32 %v762, 48
    %vm764 = vcmp.lt.s32.totalorder %v763, 108
    %v765 = vsel %vm764, %v759, %v9
    %s766 = scalar_lea.vmem [#allocation7], 212
    %v767 = vpack.c.bf16 0.0, %v765
    %s769 = ssub.s32 16, 1
    %770 = vst [vmem:[%s766] sm:%s769] %v767
    %s771 = scalar_lea.vmem %s1, 216
    %v772 = vld [vmem:[%s771] sm:$0xf]
    %v773 = vunpack.c.l.bf16 %v772
    %v774 = vunpack.c.h.bf16 %v772
    %v775 = vlaneseq
    %v776 = vshrl.u32 %v775, 7
    %v777 = vadd.s32 %v776, 48
    %vm778 = vcmp.lt.s32.totalorder %v777, 108
    %v779 = vsel %vm778, %v773, %v9
    %s780 = scalar_lea.vmem [#allocation7], 216
    %v781 = vpack.c.bf16 0.0, %v779
    %s783 = ssub.s32 16, 1
    %784 = vst [vmem:[%s780] sm:%s783] %v781
    %s785 = scalar_lea.vmem %s1, 220
    %v786 = vld [vmem:[%s785] sm:$0xf]
    %v787 = vunpack.c.l.bf16 %v786
    %v788 = vunpack.c.h.bf16 %v786
    %v789 = vlaneseq
    %v790 = vshrl.u32 %v789, 7
    %v791 = vadd.s32 %v790, 48
    %vm792 = vcmp.lt.s32.totalorder %v791, 108
    %v793 = vsel %vm792, %v787, %v9
    %s794 = scalar_lea.vmem [#allocation7], 220
    %v795 = vpack.c.bf16 0.0, %v793
    %s797 = ssub.s32 16, 1
    %798 = vst [vmem:[%s794] sm:%s797] %v795
    %s799 = scalar_lea.vmem %s1, 224
    %v800 = vld [vmem:[%s799] sm:$0xf]
    %v801 = vunpack.c.l.bf16 %v800
    %v802 = vunpack.c.h.bf16 %v800
    %v803 = vlaneseq
    %v804 = vshrl.u32 %v803, 7
    %v805 = vadd.s32 %v804, 56
    %vm806 = vcmp.lt.s32.totalorder %v805, 108
    %v807 = vsel %vm806, %v801, %v9
    %s808 = scalar_lea.vmem [#allocation7], 224
    %v809 = vpack.c.bf16 0.0, %v807
    %s811 = ssub.s32 16, 1
    %812 = vst [vmem:[%s808] sm:%s811] %v809
    %s813 = scalar_lea.vmem %s1, 228
    %v814 = vld [vmem:[%s813] sm:$0xf]
    %v815 = vunpack.c.l.bf16 %v814
    %v816 = vunpack.c.h.bf16 %v814
    %v817 = vlaneseq
    %v818 = vshrl.u32 %v817, 7
    %v819 = vadd.s32 %v818, 56
    %vm820 = vcmp.lt.s32.totalorder %v819, 108
    %v821 = vsel %vm820, %v815, %v9
    %s822 = scalar_lea.vmem [#allocation7], 228
    %v823 = vpack.c.bf16 0.0, %v821
    %s825 = ssub.s32 16, 1
    %826 = vst [vmem:[%s822] sm:%s825] %v823
    %s827 = scalar_lea.vmem %s1, 232
    %v828 = vld [vmem:[%s827] sm:$0xf]
    %v829 = vunpack.c.l.bf16 %v828
    %v830 = vunpack.c.h.bf16 %v828
    %v831 = vlaneseq
    %v832 = vshrl.u32 %v831, 7
    %v833 = vadd.s32 %v832, 56
    %vm834 = vcmp.lt.s32.totalorder %v833, 108
    %v835 = vsel %vm834, %v829, %v9
    %s836 = scalar_lea.vmem [#allocation7], 232
    %v837 = vpack.c.bf16 0.0, %v835
    %s839 = ssub.s32 16, 1
    %840 = vst [vmem:[%s836] sm:%s839] %v837
    %s841 = scalar_lea.vmem %s1, 236
    %v842 = vld [vmem:[%s841] sm:$0xf]
    %v843 = vunpack.c.l.bf16 %v842
    %v844 = vunpack.c.h.bf16 %v842
    %v845 = vlaneseq
    %v846 = vshrl.u32 %v845, 7
    %v847 = vadd.s32 %v846, 56
    %vm848 = vcmp.lt.s32.totalorder %v847, 108
    %v849 = vsel %vm848, %v843, %v9
    %s850 = scalar_lea.vmem [#allocation7], 236
    %v851 = vpack.c.bf16 0.0, %v849
    %s853 = ssub.s32 16, 1
    %854 = vst [vmem:[%s850] sm:%s853] %v851
    %s855 = scalar_lea.vmem %s1, 240
    %v856 = vld [vmem:[%s855] sm:$0xf]
    %v857 = vunpack.c.l.bf16 %v856
    %v858 = vunpack.c.h.bf16 %v856
    %v859 = vlaneseq
    %v860 = vshrl.u32 %v859, 7
    %v861 = vadd.s32 %v860, 56
    %vm862 = vcmp.lt.s32.totalorder %v861, 108
    %v863 = vsel %vm862, %v857, %v9
    %s864 = scalar_lea.vmem [#allocation7], 240
    %v865 = vpack.c.bf16 0.0, %v863
    %s867 = ssub.s32 16, 1
    %868 = vst [vmem:[%s864] sm:%s867] %v865
    %s869 = scalar_lea.vmem %s1, 244
    %v870 = vld [vmem:[%s869] sm:$0xf]
    %v871 = vunpack.c.l.bf16 %v870
    %v872 = vunpack.c.h.bf16 %v870
    %v873 = vlaneseq
    %v874 = vshrl.u32 %v873, 7
    %v875 = vadd.s32 %v874, 56
    %vm876 = vcmp.lt.s32.totalorder %v875, 108
    %v877 = vsel %vm876, %v871, %v9
    %s878 = scalar_lea.vmem [#allocation7], 244
    %v879 = vpack.c.bf16 0.0, %v877
    %s881 = ssub.s32 16, 1
    %882 = vst [vmem:[%s878] sm:%s881] %v879
    %s883 = scalar_lea.vmem %s1, 248
    %v884 = vld [vmem:[%s883] sm:$0xf]
    %v885 = vunpack.c.l.bf16 %v884
    %v886 = vunpack.c.h.bf16 %v884
    %v887 = vlaneseq
    %v888 = vshrl.u32 %v887, 7
    %v889 = vadd.s32 %v888, 56
    %vm890 = vcmp.lt.s32.totalorder %v889, 108
    %v891 = vsel %vm890, %v885, %v9
    %s892 = scalar_lea.vmem [#allocation7], 248
    %v893 = vpack.c.bf16 0.0, %v891
    %s895 = ssub.s32 16, 1
    %896 = vst [vmem:[%s892] sm:%s895] %v893
    %s897 = scalar_lea.vmem %s1, 252
    %v898 = vld [vmem:[%s897] sm:$0xf]
    %v899 = vunpack.c.l.bf16 %v898
    %v900 = vunpack.c.h.bf16 %v898
    %v901 = vlaneseq
    %v902 = vshrl.u32 %v901, 7
    %v903 = vadd.s32 %v902, 56
    %vm904 = vcmp.lt.s32.totalorder %v903, 108
    %v905 = vsel %vm904, %v899, %v9
    %s906 = scalar_lea.vmem [#allocation7], 252
    %v907 = vpack.c.bf16 0.0, %v905
    %s909 = ssub.s32 16, 1
    %910 = vst [vmem:[%s906] sm:%s909] %v907
    %s911 = scalar_lea.vmem %s1, 256
    %v912 = vld [vmem:[%s911] sm:$0xf]
    %v913 = vunpack.c.l.bf16 %v912
    %v914 = vunpack.c.h.bf16 %v912
    %v915 = vlaneseq
    %v916 = vshrl.u32 %v915, 7
    %v917 = vadd.s32 %v916, 64
    %vm918 = vcmp.lt.s32.totalorder %v917, 108
    %v919 = vsel %vm918, %v913, %v9
    %s920 = scalar_lea.vmem [#allocation7], 256
    %v921 = vpack.c.bf16 0.0, %v919
    %s923 = ssub.s32 16, 1
    %924 = vst [vmem:[%s920] sm:%s923] %v921
    %s925 = scalar_lea.vmem %s1, 260
    %v926 = vld [vmem:[%s925] sm:$0xf]
    %v927 = vunpack.c.l.bf16 %v926
    %v928 = vunpack.c.h.bf16 %v926
    %v929 = vlaneseq
    %v930 = vshrl.u32 %v929, 7
    %v931 = vadd.s32 %v930, 64
    %vm932 = vcmp.lt.s32.totalorder %v931, 108
    %v933 = vsel %vm932, %v927, %v9
    %s934 = scalar_lea.vmem [#allocation7], 260
    %v935 = vpack.c.bf16 0.0, %v933
    %s937 = ssub.s32 16, 1
    %938 = vst [vmem:[%s934] sm:%s937] %v935
    %s939 = scalar_lea.vmem %s1, 264
    %v940 = vld [vmem:[%s939] sm:$0xf]
    %v941 = vunpack.c.l.bf16 %v940
    %v942 = vunpack.c.h.bf16 %v940
    %v943 = vlaneseq
    %v944 = vshrl.u32 %v943, 7
    %v945 = vadd.s32 %v944, 64
    %vm946 = vcmp.lt.s32.totalorder %v945, 108
    %v947 = vsel %vm946, %v941, %v9
    %s948 = scalar_lea.vmem [#allocation7], 264
    %v949 = vpack.c.bf16 0.0, %v947
    %s951 = ssub.s32 16, 1
    %952 = vst [vmem:[%s948] sm:%s951] %v949
    %s953 = scalar_lea.vmem %s1, 268
    %v954 = vld [vmem:[%s953] sm:$0xf]
    %v955 = vunpack.c.l.bf16 %v954
    %v956 = vunpack.c.h.bf16 %v954
    %v957 = vlaneseq
    %v958 = vshrl.u32 %v957, 7
    %v959 = vadd.s32 %v958, 64
    %vm960 = vcmp.lt.s32.totalorder %v959, 108
    %v961 = vsel %vm960, %v955, %v9
    %s962 = scalar_lea.vmem [#allocation7], 268
    %v963 = vpack.c.bf16 0.0, %v961
    %s965 = ssub.s32 16, 1
    %966 = vst [vmem:[%s962] sm:%s965] %v963
    %s967 = scalar_lea.vmem %s1, 272
    %v968 = vld [vmem:[%s967] sm:$0xf]
    %v969 = vunpack.c.l.bf16 %v968
    %v970 = vunpack.c.h.bf16 %v968
    %v971 = vlaneseq
    %v972 = vshrl.u32 %v971, 7
    %v973 = vadd.s32 %v972, 64
    %vm974 = vcmp.lt.s32.totalorder %v973, 108
    %v975 = vsel %vm974, %v969, %v9
    %s976 = scalar_lea.vmem [#allocation7], 272
    %v977 = vpack.c.bf16 0.0, %v975
    %s979 = ssub.s32 16, 1
    %980 = vst [vmem:[%s976] sm:%s979] %v977
    %s981 = scalar_lea.vmem %s1, 276
    %v982 = vld [vmem:[%s981] sm:$0xf]
    %v983 = vunpack.c.l.bf16 %v982
    %v984 = vunpack.c.h.bf16 %v982
    %v985 = vlaneseq
    %v986 = vshrl.u32 %v985, 7
    %v987 = vadd.s32 %v986, 64
    %vm988 = vcmp.lt.s32.totalorder %v987, 108
    %v989 = vsel %vm988, %v983, %v9
    %s990 = scalar_lea.vmem [#allocation7], 276
    %v991 = vpack.c.bf16 0.0, %v989
    %s993 = ssub.s32 16, 1
    %994 = vst [vmem:[%s990] sm:%s993] %v991
    %s995 = scalar_lea.vmem %s1, 280
    %v996 = vld [vmem:[%s995] sm:$0xf]
    %v997 = vunpack.c.l.bf16 %v996
    %v998 = vunpack.c.h.bf16 %v996
    %v999 = vlaneseq
    %v1000 = vshrl.u32 %v999, 7
    %v1001 = vadd.s32 %v1000, 64
    %vm1002 = vcmp.lt.s32.totalorder %v1001, 108
    %v1003 = vsel %vm1002, %v997, %v9
    %s1004 = scalar_lea.vmem [#allocation7], 280
    %v1005 = vpack.c.bf16 0.0, %v1003
    %s1007 = ssub.s32 16, 1
    %1008 = vst [vmem:[%s1004] sm:%s1007] %v1005
    %s1009 = scalar_lea.vmem %s1, 284
    %v1010 = vld [vmem:[%s1009] sm:$0xf]
    %v1011 = vunpack.c.l.bf16 %v1010
    %v1012 = vunpack.c.h.bf16 %v1010
    %v1013 = vlaneseq
    %v1014 = vshrl.u32 %v1013, 7
    %v1015 = vadd.s32 %v1014, 64
    %vm1016 = vcmp.lt.s32.totalorder %v1015, 108
    %v1017 = vsel %vm1016, %v1011, %v9
    %s1018 = scalar_lea.vmem [#allocation7], 284
    %v1019 = vpack.c.bf16 0.0, %v1017
    %s1021 = ssub.s32 16, 1
    %1022 = vst [vmem:[%s1018] sm:%s1021] %v1019
    %s1023 = scalar_lea.vmem %s1, 288
    %v1024 = vld [vmem:[%s1023] sm:$0xf]
    %v1025 = vunpack.c.l.bf16 %v1024
    %v1026 = vunpack.c.h.bf16 %v1024
    %v1027 = vlaneseq
    %v1028 = vshrl.u32 %v1027, 7
    %v1029 = vadd.s32 %v1028, 72
    %vm1030 = vcmp.lt.s32.totalorder %v1029, 108
    %v1031 = vsel %vm1030, %v1025, %v9
    %s1032 = scalar_lea.vmem [#allocation7], 288
    %v1033 = vpack.c.bf16 0.0, %v1031
    %s1035 = ssub.s32 16, 1
    %1036 = vst [vmem:[%s1032] sm:%s1035] %v1033
    %s1037 = scalar_lea.vmem %s1, 292
    %v1038 = vld [vmem:[%s1037] sm:$0xf]
    %v1039 = vunpack.c.l.bf16 %v1038
    %v1040 = vunpack.c.h.bf16 %v1038
    %v1041 = vlaneseq
    %v1042 = vshrl.u32 %v1041, 7
    %v1043 = vadd.s32 %v1042, 72
    %vm1044 = vcmp.lt.s32.totalorder %v1043, 108
    %v1045 = vsel %vm1044, %v1039, %v9
    %s1046 = scalar_lea.vmem [#allocation7], 292
    %v1047 = vpack.c.bf16 0.0, %v1045
    %s1049 = ssub.s32 16, 1
    %1050 = vst [vmem:[%s1046] sm:%s1049] %v1047
    %s1051 = scalar_lea.vmem %s1, 296
    %v1052 = vld [vmem:[%s1051] sm:$0xf]
    %v1053 = vunpack.c.l.bf16 %v1052
    %v1054 = vunpack.c.h.bf16 %v1052
    %v1055 = vlaneseq
    %v1056 = vshrl.u32 %v1055, 7
    %v1057 = vadd.s32 %v1056, 72
    %vm1058 = vcmp.lt.s32.totalorder %v1057, 108
    %v1059 = vsel %vm1058, %v1053, %v9
    %s1060 = scalar_lea.vmem [#allocation7], 296
    %v1061 = vpack.c.bf16 0.0, %v1059
    %s1063 = ssub.s32 16, 1
    %1064 = vst [vmem:[%s1060] sm:%s1063] %v1061
    %s1065 = scalar_lea.vmem %s1, 300
    %v1066 = vld [vmem:[%s1065] sm:$0xf]
    %v1067 = vunpack.c.l.bf16 %v1066
    %v1068 = vunpack.c.h.bf16 %v1066
    %v1069 = vlaneseq
    %v1070 = vshrl.u32 %v1069, 7
    %v1071 = vadd.s32 %v1070, 72
    %vm1072 = vcmp.lt.s32.totalorder %v1071, 108
    %v1073 = vsel %vm1072, %v1067, %v9
    %s1074 = scalar_lea.vmem [#allocation7], 300
    %v1075 = vpack.c.bf16 0.0, %v1073
    %s1077 = ssub.s32 16, 1
    %1078 = vst [vmem:[%s1074] sm:%s1077] %v1075
    %s1079 = scalar_lea.vmem %s1, 304
    %v1080 = vld [vmem:[%s1079] sm:$0xf]
    %v1081 = vunpack.c.l.bf16 %v1080
    %v1082 = vunpack.c.h.bf16 %v1080
    %v1083 = vlaneseq
    %v1084 = vshrl.u32 %v1083, 7
    %v1085 = vadd.s32 %v1084, 72
    %vm1086 = vcmp.lt.s32.totalorder %v1085, 108
    %v1087 = vsel %vm1086, %v1081, %v9
    %s1088 = scalar_lea.vmem [#allocation7], 304
    %v1089 = vpack.c.bf16 0.0, %v1087
    %s1091 = ssub.s32 16, 1
    %1092 = vst [vmem:[%s1088] sm:%s1091] %v1089
    %s1093 = scalar_lea.vmem %s1, 308
    %v1094 = vld [vmem:[%s1093] sm:$0xf]
    %v1095 = vunpack.c.l.bf16 %v1094
    %v1096 = vunpack.c.h.bf16 %v1094
    %v1097 = vlaneseq
    %v1098 = vshrl.u32 %v1097, 7
    %v1099 = vadd.s32 %v1098, 72
    %vm1100 = vcmp.lt.s32.totalorder %v1099, 108
    %v1101 = vsel %vm1100, %v1095, %v9
    %s1102 = scalar_lea.vmem [#allocation7], 308
    %v1103 = vpack.c.bf16 0.0, %v1101
    %s1105 = ssub.s32 16, 1
    %1106 = vst [vmem:[%s1102] sm:%s1105] %v1103
    %s1107 = scalar_lea.vmem %s1, 312
    %v1108 = vld [vmem:[%s1107] sm:$0xf]
    %v1109 = vunpack.c.l.bf16 %v1108
    %v1110 = vunpack.c.h.bf16 %v1108
    %v1111 = vlaneseq
    %v1112 = vshrl.u32 %v1111, 7
    %v1113 = vadd.s32 %v1112, 72
    %vm1114 = vcmp.lt.s32.totalorder %v1113, 108
    %v1115 = vsel %vm1114, %v1109, %v9
    %s1116 = scalar_lea.vmem [#allocation7], 312
    %v1117 = vpack.c.bf16 0.0, %v1115
    %s1119 = ssub.s32 16, 1
    %1120 = vst [vmem:[%s1116] sm:%s1119] %v1117
    %s1121 = scalar_lea.vmem %s1, 316
    %v1122 = vld [vmem:[%s1121] sm:$0xf]
    %v1123 = vunpack.c.l.bf16 %v1122
    %v1124 = vunpack.c.h.bf16 %v1122
    %v1125 = vlaneseq
    %v1126 = vshrl.u32 %v1125, 7
    %v1127 = vadd.s32 %v1126, 72
    %vm1128 = vcmp.lt.s32.totalorder %v1127, 108
    %v1129 = vsel %vm1128, %v1123, %v9
    %s1130 = scalar_lea.vmem [#allocation7], 316
    %v1131 = vpack.c.bf16 0.0, %v1129
    %s1133 = ssub.s32 16, 1
    %1134 = vst [vmem:[%s1130] sm:%s1133] %v1131
    %s1135 = scalar_lea.vmem %s1, 320
    %v1136 = vld [vmem:[%s1135] sm:$0xf]
    %v1137 = vunpack.c.l.bf16 %v1136
    %v1138 = vunpack.c.h.bf16 %v1136
    %v1139 = vlaneseq
    %v1140 = vshrl.u32 %v1139, 7
    %v1141 = vadd.s32 %v1140, 80
    %vm1142 = vcmp.lt.s32.totalorder %v1141, 108
    %v1143 = vsel %vm1142, %v1137, %v9
    %s1144 = scalar_lea.vmem [#allocation7], 320
    %v1145 = vpack.c.bf16 0.0, %v1143
    %s1147 = ssub.s32 16, 1
    %1148 = vst [vmem:[%s1144] sm:%s1147] %v1145
    %s1149 = scalar_lea.vmem %s1, 324
    %v1150 = vld [vmem:[%s1149] sm:$0xf]
    %v1151 = vunpack.c.l.bf16 %v1150
    %v1152 = vunpack.c.h.bf16 %v1150
    %v1153 = vlaneseq
    %v1154 = vshrl.u32 %v1153, 7
    %v1155 = vadd.s32 %v1154, 80
    %vm1156 = vcmp.lt.s32.totalorder %v1155, 108
    %v1157 = vsel %vm1156, %v1151, %v9
    %s1158 = scalar_lea.vmem [#allocation7], 324
    %v1159 = vpack.c.bf16 0.0, %v1157
    %s1161 = ssub.s32 16, 1
    %1162 = vst [vmem:[%s1158] sm:%s1161] %v1159
    %s1163 = scalar_lea.vmem %s1, 328
    %v1164 = vld [vmem:[%s1163] sm:$0xf]
    %v1165 = vunpack.c.l.bf16 %v1164
    %v1166 = vunpack.c.h.bf16 %v1164
    %v1167 = vlaneseq
    %v1168 = vshrl.u32 %v1167, 7
    %v1169 = vadd.s32 %v1168, 80
    %vm1170 = vcmp.lt.s32.totalorder %v1169, 108
    %v1171 = vsel %vm1170, %v1165, %v9
    %s1172 = scalar_lea.vmem [#allocation7], 328
    %v1173 = vpack.c.bf16 0.0, %v1171
    %s1175 = ssub.s32 16, 1
    %1176 = vst [vmem:[%s1172] sm:%s1175] %v1173
    %s1177 = scalar_lea.vmem %s1, 332
    %v1178 = vld [vmem:[%s1177] sm:$0xf]
    %v1179 = vunpack.c.l.bf16 %v1178
    %v1180 = vunpack.c.h.bf16 %v1178
    %v1181 = vlaneseq
    %v1182 = vshrl.u32 %v1181, 7
    %v1183 = vadd.s32 %v1182, 80
    %vm1184 = vcmp.lt.s32.totalorder %v1183, 108
    %v1185 = vsel %vm1184, %v1179, %v9
    %s1186 = scalar_lea.vmem [#allocation7], 332
    %v1187 = vpack.c.bf16 0.0, %v1185
    %s1189 = ssub.s32 16, 1
    %1190 = vst [vmem:[%s1186] sm:%s1189] %v1187
    %s1191 = scalar_lea.vmem %s1, 336
    %v1192 = vld [vmem:[%s1191] sm:$0xf]
    %v1193 = vunpack.c.l.bf16 %v1192
    %v1194 = vunpack.c.h.bf16 %v1192
    %v1195 = vlaneseq
    %v1196 = vshrl.u32 %v1195, 7
    %v1197 = vadd.s32 %v1196, 80
    %vm1198 = vcmp.lt.s32.totalorder %v1197, 108
    %v1199 = vsel %vm1198, %v1193, %v9
    %s1200 = scalar_lea.vmem [#allocation7], 336
    %v1201 = vpack.c.bf16 0.0, %v1199
    %s1203 = ssub.s32 16, 1
    %1204 = vst [vmem:[%s1200] sm:%s1203] %v1201
    %s1205 = scalar_lea.vmem %s1, 340
    %v1206 = vld [vmem:[%s1205] sm:$0xf]
    %v1207 = vunpack.c.l.bf16 %v1206
    %v1208 = vunpack.c.h.bf16 %v1206
    %v1209 = vlaneseq
    %v1210 = vshrl.u32 %v1209, 7
    %v1211 = vadd.s32 %v1210, 80
    %vm1212 = vcmp.lt.s32.totalorder %v1211, 108
    %v1213 = vsel %vm1212, %v1207, %v9
    %s1214 = scalar_lea.vmem [#allocation7], 340
    %v1215 = vpack.c.bf16 0.0, %v1213
    %s1217 = ssub.s32 16, 1
    %1218 = vst [vmem:[%s1214] sm:%s1217] %v1215
    %s1219 = scalar_lea.vmem %s1, 344
    %v1220 = vld [vmem:[%s1219] sm:$0xf]
    %v1221 = vunpack.c.l.bf16 %v1220
    %v1222 = vunpack.c.h.bf16 %v1220
    %v1223 = vlaneseq
    %v1224 = vshrl.u32 %v1223, 7
    %v1225 = vadd.s32 %v1224, 80
    %vm1226 = vcmp.lt.s32.totalorder %v1225, 108
    %v1227 = vsel %vm1226, %v1221, %v9
    %s1228 = scalar_lea.vmem [#allocation7], 344
    %v1229 = vpack.c.bf16 0.0, %v1227
    %s1231 = ssub.s32 16, 1
    %1232 = vst [vmem:[%s1228] sm:%s1231] %v1229
    %s1233 = scalar_lea.vmem %s1, 348
    %v1234 = vld [vmem:[%s1233] sm:$0xf]
    %v1235 = vunpack.c.l.bf16 %v1234
    %v1236 = vunpack.c.h.bf16 %v1234
    %v1237 = vlaneseq
    %v1238 = vshrl.u32 %v1237, 7
    %v1239 = vadd.s32 %v1238, 80
    %vm1240 = vcmp.lt.s32.totalorder %v1239, 108
    %v1241 = vsel %vm1240, %v1235, %v9
    %s1242 = scalar_lea.vmem [#allocation7], 348
    %v1243 = vpack.c.bf16 0.0, %v1241
    %s1245 = ssub.s32 16, 1
    %1246 = vst [vmem:[%s1242] sm:%s1245] %v1243
    %s1247 = scalar_lea.vmem %s1, 352
    %s1249 = sor.u32 255, 127
    %s1250 = sand.u32 %s1249, 85
    %s1251 = sshrl.u32 %s1250, 1
    %s1252 = sor.u32 %s1250, %s1251
    %s1253 = sand.u32 51, %s1252
    %s1254 = sshrl.u32 %s1253, 2
    %s1255 = sor.u32 %s1253, %s1254
    %s1256 = sand.u32 15, %s1255
    %v1257 = vld [vmem:[%s1247] sm:%s1256]
    %v1258 = vunpack.c.l.bf16 %v1257
    %v1259 = vunpack.c.h.bf16 %v1257
    %v1260 = vlaneseq
    %v1261 = vshrl.u32 %v1260, 7
    %v1262 = vadd.s32 %v1261, 88
    %vm1263 = vcmp.lt.s32.totalorder %v1262, 108
    %v1264 = vsel %vm1263, %v1258, %v9
    %s1265 = scalar_lea.vmem [#allocation7], 352
    %v1266 = vpack.c.bf16 0.0, %v1264
    %s1268 = ssub.s32 16, 1
    %1269 = vst [vmem:[%s1265] sm:%s1268] %v1266
    %s1270 = scalar_lea.vmem %s1, 356
    %s1272 = sor.u32 255, 127
    %s1273 = sand.u32 %s1272, 85
    %s1274 = sshrl.u32 %s1273, 1
    %s1275 = sor.u32 %s1273, %s1274
    %s1276 = sand.u32 51, %s1275
    %s1277 = sshrl.u32 %s1276, 2
    %s1278 = sor.u32 %s1276, %s1277
    %s1279 = sand.u32 15, %s1278
    %v1280 = vld [vmem:[%s1270] sm:%s1279]
    %v1281 = vunpack.c.l.bf16 %v1280
    %v1282 = vunpack.c.h.bf16 %v1280
    %v1283 = vlaneseq
    %v1284 = vshrl.u32 %v1283, 7
    %v1285 = vadd.s32 %v1284, 88
    %vm1286 = vcmp.lt.s32.totalorder %v1285, 108
    %v1287 = vsel %vm1286, %v1281, %v9
    %s1288 = scalar_lea.vmem [#allocation7], 356
    %v1289 = vpack.c.bf16 0.0, %v1287
    %s1291 = ssub.s32 16, 1
    %1292 = vst [vmem:[%s1288] sm:%s1291] %v1289
    %s1293 = scalar_lea.vmem %s1, 360
    %s1295 = sor.u32 255, 127
    %s1296 = sand.u32 %s1295, 85
    %s1297 = sshrl.u32 %s1296, 1
    %s1298 = sor.u32 %s1296, %s1297
    %s1299 = sand.u32 51, %s1298
    %s1300 = sshrl.u32 %s1299, 2
    %s1301 = sor.u32 %s1299, %s1300
    %s1302 = sand.u32 15, %s1301
    %v1303 = vld [vmem:[%s1293] sm:%s1302]
    %v1304 = vunpack.c.l.bf16 %v1303
    %v1305 = vunpack.c.h.bf16 %v1303
    %v1306 = vlaneseq
    %v1307 = vshrl.u32 %v1306, 7
    %v1308 = vadd.s32 %v1307, 88
    %vm1309 = vcmp.lt.s32.totalorder %v1308, 108
    %v1310 = vsel %vm1309, %v1304, %v9
    %s1311 = scalar_lea.vmem [#allocation7], 360
    %v1312 = vpack.c.bf16 0.0, %v1310
    %s1314 = ssub.s32 16, 1
    %1315 = vst [vmem:[%s1311] sm:%s1314] %v1312
    %s1316 = scalar_lea.vmem %s1, 364
    %s1318 = sor.u32 255, 127
    %s1319 = sand.u32 %s1318, 85
    %s1320 = sshrl.u32 %s1319, 1
    %s1321 = sor.u32 %s1319, %s1320
    %s1322 = sand.u32 51, %s1321
    %s1323 = sshrl.u32 %s1322, 2
    %s1324 = sor.u32 %s1322, %s1323
    %s1325 = sand.u32 15, %s1324
    %v1326 = vld [vmem:[%s1316] sm:%s1325]
    %v1327 = vunpack.c.l.bf16 %v1326
    %v1328 = vunpack.c.h.bf16 %v1326
    %v1329 = vlaneseq
    %v1330 = vshrl.u32 %v1329, 7
    %v1331 = vadd.s32 %v1330, 88
    %vm1332 = vcmp.lt.s32.totalorder %v1331, 108
    %v1333 = vsel %vm1332, %v1327, %v9
    %s1334 = scalar_lea.vmem [#allocation7], 364
    %v1335 = vpack.c.bf16 0.0, %v1333
    %s1337 = ssub.s32 16, 1
    %1338 = vst [vmem:[%s1334] sm:%s1337] %v1335
    %s1339 = scalar_lea.vmem %s1, 368
    %s1341 = sor.u32 255, 127
    %s1342 = sand.u32 %s1341, 85
    %s1343 = sshrl.u32 %s1342, 1
    %s1344 = sor.u32 %s1342, %s1343
    %s1345 = sand.u32 51, %s1344
    %s1346 = sshrl.u32 %s1345, 2
    %s1347 = sor.u32 %s1345, %s1346
    %s1348 = sand.u32 15, %s1347
    %v1349 = vld [vmem:[%s1339] sm:%s1348]
    %v1350 = vunpack.c.l.bf16 %v1349
    %v1351 = vunpack.c.h.bf16 %v1349
    %v1352 = vlaneseq
    %v1353 = vshrl.u32 %v1352, 7
    %v1354 = vadd.s32 %v1353, 88
    %vm1355 = vcmp.lt.s32.totalorder %v1354, 108
    %v1356 = vsel %vm1355, %v1350, %v9
    %s1357 = scalar_lea.vmem [#allocation7], 368
    %v1358 = vpack.c.bf16 0.0, %v1356
    %s1360 = ssub.s32 16, 1
    %1361 = vst [vmem:[%s1357] sm:%s1360] %v1358
    %s1362 = scalar_lea.vmem %s1, 372
    %s1364 = sor.u32 255, 127
    %s1365 = sand.u32 %s1364, 85
    %s1366 = sshrl.u32 %s1365, 1
    %s1367 = sor.u32 %s1365, %s1366
    %s1368 = sand.u32 51, %s1367
    %s1369 = sshrl.u32 %s1368, 2
    %s1370 = sor.u32 %s1368, %s1369
    %s1371 = sand.u32 15, %s1370
    %v1372 = vld [vmem:[%s1362] sm:%s1371]
    %v1373 = vunpack.c.l.bf16 %v1372
    %v1374 = vunpack.c.h.bf16 %v1372
    %v1375 = vlaneseq
    %v1376 = vshrl.u32 %v1375, 7
    %v1377 = vadd.s32 %v1376, 88
    %vm1378 = vcmp.lt.s32.totalorder %v1377, 108
    %v1379 = vsel %vm1378, %v1373, %v9
    %s1380 = scalar_lea.vmem [#allocation7], 372
    %v1381 = vpack.c.bf16 0.0, %v1379
    %s1383 = ssub.s32 16, 1
    %1384 = vst [vmem:[%s1380] sm:%s1383] %v1381
    %s1385 = scalar_lea.vmem %s1, 376
    %s1387 = sor.u32 255, 127
    %s1388 = sand.u32 %s1387, 85
    %s1389 = sshrl.u32 %s1388, 1
    %s1390 = sor.u32 %s1388, %s1389
    %s1391 = sand.u32 51, %s1390
    %s1392 = sshrl.u32 %s1391, 2
    %s1393 = sor.u32 %s1391, %s1392
    %s1394 = sand.u32 15, %s1393
    %v1395 = vld [vmem:[%s1385] sm:%s1394]
    %v1396 = vunpack.c.l.bf16 %v1395
    %v1397 = vunpack.c.h.bf16 %v1395
    %v1398 = vlaneseq
    %v1399 = vshrl.u32 %v1398, 7
    %v1400 = vadd.s32 %v1399, 88
    %vm1401 = vcmp.lt.s32.totalorder %v1400, 108
    %v1402 = vsel %vm1401, %v1396, %v9
    %s1403 = scalar_lea.vmem [#allocation7], 376
    %v1404 = vpack.c.bf16 0.0, %v1402
    %s1406 = ssub.s32 16, 1
    %1407 = vst [vmem:[%s1403] sm:%s1406] %v1404
    %s1408 = scalar_lea.vmem %s1, 380
    %s1410 = sor.u32 255, 127
    %s1411 = sand.u32 %s1410, 85
    %s1412 = sshrl.u32 %s1411, 1
    %s1413 = sor.u32 %s1411, %s1412
    %s1414 = sand.u32 51, %s1413
    %s1415 = sshrl.u32 %s1414, 2
    %s1416 = sor.u32 %s1414, %s1415
    %s1417 = sand.u32 15, %s1416
    %v1418 = vld [vmem:[%s1408] sm:%s1417]
    %v1419 = vunpack.c.l.bf16 %v1418
    %v1420 = vunpack.c.h.bf16 %v1418
    %v1421 = vlaneseq
    %v1422 = vshrl.u32 %v1421, 7
    %v1423 = vadd.s32 %v1422, 88
    %vm1424 = vcmp.lt.s32.totalorder %v1423, 108
    %v1425 = vsel %vm1424, %v1419, %v9
    %s1426 = scalar_lea.vmem [#allocation7], 380
    %v1427 = vpack.c.bf16 0.0, %v1425
    %s1429 = ssub.s32 16, 1
    %1430 = vst [vmem:[%s1426] sm:%s1429] %v1427
    %s1431 = scalar_lea.vmem %s1, 384
    %s1433 = sor.u32 255, 127
    %s1434 = sand.u32 %s1433, 85
    %s1435 = sshrl.u32 %s1434, 1
    %s1436 = sor.u32 %s1434, %s1435
    %s1437 = sand.u32 51, %s1436
    %s1438 = sshrl.u32 %s1437, 2
    %s1439 = sor.u32 %s1437, %s1438
    %s1440 = sand.u32 15, %s1439
    %v1441 = vld [vmem:[%s1431] sm:%s1440]
    %v1442 = vunpack.c.l.bf16 %v1441
    %v1443 = vunpack.c.h.bf16 %v1441
    %v1444 = vlaneseq
    %v1445 = vshrl.u32 %v1444, 7
    %v1446 = vadd.s32 %v1445, 96
    %vm1447 = vcmp.lt.s32.totalorder %v1446, 108
    %v1448 = vsel %vm1447, %v1442, %v9
    %s1449 = scalar_lea.vmem [#allocation7], 384
    %v1450 = vpack.c.bf16 0.0, %v1448
    %s1452 = ssub.s32 16, 1
    %1453 = vst [vmem:[%s1449] sm:%s1452] %v1450
    %s1454 = scalar_lea.vmem %s1, 388
    %s1456 = sor.u32 255, 127
    %s1457 = sand.u32 %s1456, 85
    %s1458 = sshrl.u32 %s1457, 1
    %s1459 = sor.u32 %s1457, %s1458
    %s1460 = sand.u32 51, %s1459
    %s1461 = sshrl.u32 %s1460, 2
    %s1462 = sor.u32 %s1460, %s1461
    %s1463 = sand.u32 15, %s1462
    %v1464 = vld [vmem:[%s1454] sm:%s1463]
    %v1465 = vunpack.c.l.bf16 %v1464
    %v1466 = vunpack.c.h.bf16 %v1464
    %v1467 = vlaneseq
    %v1468 = vshrl.u32 %v1467, 7
    %v1469 = vadd.s32 %v1468, 96
    %vm1470 = vcmp.lt.s32.totalorder %v1469, 108
    %v1471 = vsel %vm1470, %v1465, %v9
    %s1472 = scalar_lea.vmem [#allocation7], 388
    %v1473 = vpack.c.bf16 0.0, %v1471
    %s1475 = ssub.s32 16, 1
    %1476 = vst [vmem:[%s1472] sm:%s1475] %v1473
    %s1477 = scalar_lea.vmem %s1, 392
    %s1479 = sor.u32 255, 127
    %s1480 = sand.u32 %s1479, 85
    %s1481 = sshrl.u32 %s1480, 1
    %s1482 = sor.u32 %s1480, %s1481
    %s1483 = sand.u32 51, %s1482
    %s1484 = sshrl.u32 %s1483, 2
    %s1485 = sor.u32 %s1483, %s1484
    %s1486 = sand.u32 15, %s1485
    %v1487 = vld [vmem:[%s1477] sm:%s1486]
    %v1488 = vunpack.c.l.bf16 %v1487
    %v1489 = vunpack.c.h.bf16 %v1487
    %v1490 = vlaneseq
    %v1491 = vshrl.u32 %v1490, 7
    %v1492 = vadd.s32 %v1491, 96
    %vm1493 = vcmp.lt.s32.totalorder %v1492, 108
    %v1494 = vsel %vm1493, %v1488, %v9
    %s1495 = scalar_lea.vmem [#allocation7], 392
    %v1496 = vpack.c.bf16 0.0, %v1494
    %s1498 = ssub.s32 16, 1
    %1499 = vst [vmem:[%s1495] sm:%s1498] %v1496
    %s1500 = scalar_lea.vmem %s1, 396
    %s1502 = sor.u32 255, 127
    %s1503 = sand.u32 %s1502, 85
    %s1504 = sshrl.u32 %s1503, 1
    %s1505 = sor.u32 %s1503, %s1504
    %s1506 = sand.u32 51, %s1505
    %s1507 = sshrl.u32 %s1506, 2
    %s1508 = sor.u32 %s1506, %s1507
    %s1509 = sand.u32 15, %s1508
    %v1510 = vld [vmem:[%s1500] sm:%s1509]
    %v1511 = vunpack.c.l.bf16 %v1510
    %v1512 = vunpack.c.h.bf16 %v1510
    %v1513 = vlaneseq
    %v1514 = vshrl.u32 %v1513, 7
    %v1515 = vadd.s32 %v1514, 96
    %vm1516 = vcmp.lt.s32.totalorder %v1515, 108
    %v1517 = vsel %vm1516, %v1511, %v9
    %s1518 = scalar_lea.vmem [#allocation7], 396
    %v1519 = vpack.c.bf16 0.0, %v1517
    %s1521 = ssub.s32 16, 1
    %1522 = vst [vmem:[%s1518] sm:%s1521] %v1519
    %s1523 = scalar_lea.vmem %s1, 400
    %s1525 = sor.u32 255, 127
    %s1526 = sand.u32 %s1525, 85
    %s1527 = sshrl.u32 %s1526, 1
    %s1528 = sor.u32 %s1526, %s1527
    %s1529 = sand.u32 51, %s1528
    %s1530 = sshrl.u32 %s1529, 2
    %s1531 = sor.u32 %s1529, %s1530
    %s1532 = sand.u32 15, %s1531
    %v1533 = vld [vmem:[%s1523] sm:%s1532]
    %v1534 = vunpack.c.l.bf16 %v1533
    %v1535 = vunpack.c.h.bf16 %v1533
    %v1536 = vlaneseq
    %v1537 = vshrl.u32 %v1536, 7
    %v1538 = vadd.s32 %v1537, 96
    %vm1539 = vcmp.lt.s32.totalorder %v1538, 108
    %v1540 = vsel %vm1539, %v1534, %v9
    %s1541 = scalar_lea.vmem [#allocation7], 400
    %v1542 = vpack.c.bf16 0.0, %v1540
    %s1544 = ssub.s32 16, 1
    %1545 = vst [vmem:[%s1541] sm:%s1544] %v1542
    %s1546 = scalar_lea.vmem %s1, 404
    %s1548 = sor.u32 255, 127
    %s1549 = sand.u32 %s1548, 85
    %s1550 = sshrl.u32 %s1549, 1
    %s1551 = sor.u32 %s1549, %s1550
    %s1552 = sand.u32 51, %s1551
    %s1553 = sshrl.u32 %s1552, 2
    %s1554 = sor.u32 %s1552, %s1553
    %s1555 = sand.u32 15, %s1554
    %v1556 = vld [vmem:[%s1546] sm:%s1555]
    %v1557 = vunpack.c.l.bf16 %v1556
    %v1558 = vunpack.c.h.bf16 %v1556
    %v1559 = vlaneseq
    %v1560 = vshrl.u32 %v1559, 7
    %v1561 = vadd.s32 %v1560, 96
    %vm1562 = vcmp.lt.s32.totalorder %v1561, 108
    %v1563 = vsel %vm1562, %v1557, %v9
    %s1564 = scalar_lea.vmem [#allocation7], 404
    %v1565 = vpack.c.bf16 0.0, %v1563
    %s1567 = ssub.s32 16, 1
    %1568 = vst [vmem:[%s1564] sm:%s1567] %v1565
    %s1569 = scalar_lea.vmem %s1, 408
    %s1571 = sor.u32 255, 127
    %s1572 = sand.u32 %s1571, 85
    %s1573 = sshrl.u32 %s1572, 1
    %s1574 = sor.u32 %s1572, %s1573
    %s1575 = sand.u32 51, %s1574
    %s1576 = sshrl.u32 %s1575, 2
    %s1577 = sor.u32 %s1575, %s1576
    %s1578 = sand.u32 15, %s1577
    %v1579 = vld [vmem:[%s1569] sm:%s1578]
    %v1580 = vunpack.c.l.bf16 %v1579
    %v1581 = vunpack.c.h.bf16 %v1579
    %v1582 = vlaneseq
    %v1583 = vshrl.u32 %v1582, 7
    %v1584 = vadd.s32 %v1583, 96
    %vm1585 = vcmp.lt.s32.totalorder %v1584, 108
    %v1586 = vsel %vm1585, %v1580, %v9
    %s1587 = scalar_lea.vmem [#allocation7], 408
    %v1588 = vpack.c.bf16 0.0, %v1586
    %s1590 = ssub.s32 16, 1
    %1591 = vst [vmem:[%s1587] sm:%s1590] %v1588
    %s1592 = scalar_lea.vmem %s1, 412
    %s1594 = sor.u32 255, 127
    %s1595 = sand.u32 %s1594, 85
    %s1596 = sshrl.u32 %s1595, 1
    %s1597 = sor.u32 %s1595, %s1596
    %s1598 = sand.u32 51, %s1597
    %s1599 = sshrl.u32 %s1598, 2
    %s1600 = sor.u32 %s1598, %s1599
    %s1601 = sand.u32 15, %s1600
    %v1602 = vld [vmem:[%s1592] sm:%s1601]
    %v1603 = vunpack.c.l.bf16 %v1602
    %v1604 = vunpack.c.h.bf16 %v1602
    %v1605 = vlaneseq
    %v1606 = vshrl.u32 %v1605, 7
    %v1607 = vadd.s32 %v1606, 96
    %vm1608 = vcmp.lt.s32.totalorder %v1607, 108
    %v1609 = vsel %vm1608, %v1603, %v9
    %s1610 = scalar_lea.vmem [#allocation7], 412
    %v1611 = vpack.c.bf16 0.0, %v1609
    %s1613 = ssub.s32 16, 1
    %1614 = vst [vmem:[%s1610] sm:%s1613] %v1611
    %s1615 = scalar_lea.vmem %s1, 416
    %s1617 = sor.u32 255, 127
    %s1618 = sand.u32 %s1617, 85
    %s1619 = sshrl.u32 %s1618, 1
    %s1620 = sor.u32 %s1618, %s1619
    %s1621 = sand.u32 51, %s1620
    %s1622 = sshrl.u32 %s1621, 2
    %s1623 = sor.u32 %s1621, %s1622
    %s1624 = sand.u32 15, %s1623
    %v1625 = vld [vmem:[%s1615] sm:%s1624]
    %v1626 = vunpack.c.l.bf16 %v1625
    %v1627 = vunpack.c.h.bf16 %v1625
    %v1628 = vlaneseq
    %v1629 = vshrl.u32 %v1628, 7
    %v1630 = vadd.s32 %v1629, 104
    %vm1631 = vcmp.lt.s32.totalorder %v1630, 108
    %v1632 = vsel %vm1631, %v1626, %v9
    %s1633 = scalar_lea.vmem [#allocation7], 416
    %v1634 = vpack.c.bf16 0.0, %v1632
    %s1636 = ssub.s32 16, 1
    %1637 = vst [vmem:[%s1633] sm:%s1636] %v1634
    %s1638 = scalar_lea.vmem %s1, 420
    %s1640 = sor.u32 255, 127
    %s1641 = sand.u32 %s1640, 85
    %s1642 = sshrl.u32 %s1641, 1
    %s1643 = sor.u32 %s1641, %s1642
    %s1644 = sand.u32 51, %s1643
    %s1645 = sshrl.u32 %s1644, 2
    %s1646 = sor.u32 %s1644, %s1645
    %s1647 = sand.u32 15, %s1646
    %v1648 = vld [vmem:[%s1638] sm:%s1647]
    %v1649 = vunpack.c.l.bf16 %v1648
    %v1650 = vunpack.c.h.bf16 %v1648
    %v1651 = vlaneseq
    %v1652 = vshrl.u32 %v1651, 7
    %v1653 = vadd.s32 %v1652, 104
    %vm1654 = vcmp.lt.s32.totalorder %v1653, 108
    %v1655 = vsel %vm1654, %v1649, %v9
    %s1656 = scalar_lea.vmem [#allocation7], 420
    %v1657 = vpack.c.bf16 0.0, %v1655
    %s1659 = ssub.s32 16, 1
    %1660 = vst [vmem:[%s1656] sm:%s1659] %v1657
    %s1661 = scalar_lea.vmem %s1, 424
    %s1663 = sor.u32 255, 127
    %s1664 = sand.u32 %s1663, 85
    %s1665 = sshrl.u32 %s1664, 1
    %s1666 = sor.u32 %s1664, %s1665
    %s1667 = sand.u32 51, %s1666
    %s1668 = sshrl.u32 %s1667, 2
    %s1669 = sor.u32 %s1667, %s1668
    %s1670 = sand.u32 15, %s1669
    %v1671 = vld [vmem:[%s1661] sm:%s1670]
    %v1672 = vunpack.c.l.bf16 %v1671
    %v1673 = vunpack.c.h.bf16 %v1671
    %v1674 = vlaneseq
    %v1675 = vshrl.u32 %v1674, 7
    %v1676 = vadd.s32 %v1675, 104
    %vm1677 = vcmp.lt.s32.totalorder %v1676, 108
    %v1678 = vsel %vm1677, %v1672, %v9
    %s1679 = scalar_lea.vmem [#allocation7], 424
    %v1680 = vpack.c.bf16 0.0, %v1678
    %s1682 = ssub.s32 16, 1
    %1683 = vst [vmem:[%s1679] sm:%s1682] %v1680
    %s1684 = scalar_lea.vmem %s1, 428
    %s1686 = sor.u32 255, 127
    %s1687 = sand.u32 %s1686, 85
    %s1688 = sshrl.u32 %s1687, 1
    %s1689 = sor.u32 %s1687, %s1688
    %s1690 = sand.u32 51, %s1689
    %s1691 = sshrl.u32 %s1690, 2
    %s1692 = sor.u32 %s1690, %s1691
    %s1693 = sand.u32 15, %s1692
    %v1694 = vld [vmem:[%s1684] sm:%s1693]
    %v1695 = vunpack.c.l.bf16 %v1694
    %v1696 = vunpack.c.h.bf16 %v1694
    %v1697 = vlaneseq
    %v1698 = vshrl.u32 %v1697, 7
    %v1699 = vadd.s32 %v1698, 104
    %vm1700 = vcmp.lt.s32.totalorder %v1699, 108
    %v1701 = vsel %vm1700, %v1695, %v9
    %s1702 = scalar_lea.vmem [#allocation7], 428
    %v1703 = vpack.c.bf16 0.0, %v1701
    %s1705 = ssub.s32 16, 1
    %1706 = vst [vmem:[%s1702] sm:%s1705] %v1703
    %s1707 = scalar_lea.vmem %s1, 432
    %s1709 = sor.u32 255, 127
    %s1710 = sand.u32 %s1709, 85
    %s1711 = sshrl.u32 %s1710, 1
    %s1712 = sor.u32 %s1710, %s1711
    %s1713 = sand.u32 51, %s1712
    %s1714 = sshrl.u32 %s1713, 2
    %s1715 = sor.u32 %s1713, %s1714
    %s1716 = sand.u32 15, %s1715
    %v1717 = vld [vmem:[%s1707] sm:%s1716]
    %v1718 = vunpack.c.l.bf16 %v1717
    %v1719 = vunpack.c.h.bf16 %v1717
    %v1720 = vlaneseq
    %v1721 = vshrl.u32 %v1720, 7
    %v1722 = vadd.s32 %v1721, 104
    %vm1723 = vcmp.lt.s32.totalorder %v1722, 108
    %v1724 = vsel %vm1723, %v1718, %v9
    %s1725 = scalar_lea.vmem [#allocation7], 432
    %v1726 = vpack.c.bf16 0.0, %v1724
    %s1728 = ssub.s32 16, 1
    %1729 = vst [vmem:[%s1725] sm:%s1728] %v1726
    %s1730 = scalar_lea.vmem %s1, 436
    %s1732 = sor.u32 255, 127
    %s1733 = sand.u32 %s1732, 85
    %s1734 = sshrl.u32 %s1733, 1
    %s1735 = sor.u32 %s1733, %s1734
    %s1736 = sand.u32 51, %s1735
    %s1737 = sshrl.u32 %s1736, 2
    %s1738 = sor.u32 %s1736, %s1737
    %s1739 = sand.u32 15, %s1738
    %v1740 = vld [vmem:[%s1730] sm:%s1739]
    %v1741 = vunpack.c.l.bf16 %v1740
    %v1742 = vunpack.c.h.bf16 %v1740
    %v1743 = vlaneseq
    %v1744 = vshrl.u32 %v1743, 7
    %v1745 = vadd.s32 %v1744, 104
    %vm1746 = vcmp.lt.s32.totalorder %v1745, 108
    %v1747 = vsel %vm1746, %v1741, %v9
    %s1748 = scalar_lea.vmem [#allocation7], 436
    %v1749 = vpack.c.bf16 0.0, %v1747
    %s1751 = ssub.s32 16, 1
    %1752 = vst [vmem:[%s1748] sm:%s1751] %v1749
    %s1753 = scalar_lea.vmem %s1, 440
    %s1755 = sor.u32 255, 127
    %s1756 = sand.u32 %s1755, 85
    %s1757 = sshrl.u32 %s1756, 1
    %s1758 = sor.u32 %s1756, %s1757
    %s1759 = sand.u32 51, %s1758
    %s1760 = sshrl.u32 %s1759, 2
    %s1761 = sor.u32 %s1759, %s1760
    %s1762 = sand.u32 15, %s1761
    %v1763 = vld [vmem:[%s1753] sm:%s1762]
    %v1764 = vunpack.c.l.bf16 %v1763
    %v1765 = vunpack.c.h.bf16 %v1763
    %v1766 = vlaneseq
    %v1767 = vshrl.u32 %v1766, 7
    %v1768 = vadd.s32 %v1767, 104
    %vm1769 = vcmp.lt.s32.totalorder %v1768, 108
    %v1770 = vsel %vm1769, %v1764, %v9
    %s1771 = scalar_lea.vmem [#allocation7], 440
    %v1772 = vpack.c.bf16 0.0, %v1770
    %s1774 = ssub.s32 16, 1
    %1775 = vst [vmem:[%s1771] sm:%s1774] %v1772
    %s1776 = scalar_lea.vmem %s1, 444
    %s1778 = sor.u32 255, 127
    %s1779 = sand.u32 %s1778, 85
    %s1780 = sshrl.u32 %s1779, 1
    %s1781 = sor.u32 %s1779, %s1780
    %s1782 = sand.u32 51, %s1781
    %s1783 = sshrl.u32 %s1782, 2
    %s1784 = sor.u32 %s1782, %s1783
    %s1785 = sand.u32 15, %s1784
    %v1786 = vld [vmem:[%s1776] sm:%s1785]
    %v1787 = vunpack.c.l.bf16 %v1786
    %v1788 = vunpack.c.h.bf16 %v1786
    %v1789 = vlaneseq
    %v1790 = vshrl.u32 %v1789, 7
    %v1791 = vadd.s32 %v1790, 104
    %vm1792 = vcmp.lt.s32.totalorder %v1791, 108
    %v1793 = vsel %vm1792, %v1787, %v9
    %s1794 = scalar_lea.vmem [#allocation7], 444
    %v1795 = vpack.c.bf16 0.0, %v1793
    %s1797 = ssub.s32 16, 1
    %1798 = vst [vmem:[%s1794] sm:%s1797] %v1795
    %s1799 = scalar_lea.vmem [#allocation7], 448
    %v1800 = vpack.c.bf16 0.0, %v9
    %s1802 = ssub.s32 16, 1
    %1803 = vst [vmem:[%s1799] sm:%s1802] %v1800
    %s1804 = scalar_lea.vmem [#allocation7], 452
    %v1805 = vpack.c.bf16 0.0, %v9
    %s1807 = ssub.s32 16, 1
    %1808 = vst [vmem:[%s1804] sm:%s1807] %v1805
    %s1809 = scalar_lea.vmem [#allocation7], 456
    %v1810 = vpack.c.bf16 0.0, %v9
    %s1812 = ssub.s32 16, 1
    %1813 = vst [vmem:[%s1809] sm:%s1812] %v1810
    %s1814 = scalar_lea.vmem [#allocation7], 460
    %v1815 = vpack.c.bf16 0.0, %v9
    %s1817 = ssub.s32 16, 1
    %1818 = vst [vmem:[%s1814] sm:%s1817] %v1815
    %s1819 = scalar_lea.vmem [#allocation7], 464
    %v1820 = vpack.c.bf16 0.0, %v9
    %s1822 = ssub.s32 16, 1
    %1823 = vst [vmem:[%s1819] sm:%s1822] %v1820
    %s1824 = scalar_lea.vmem [#allocation7], 468
    %v1825 = vpack.c.bf16 0.0, %v9
    %s1827 = ssub.s32 16, 1
    %1828 = vst [vmem:[%s1824] sm:%s1827] %v1825
    %s1829 = scalar_lea.vmem [#allocation7], 472
    %v1830 = vpack.c.bf16 0.0, %v9
    %s1832 = ssub.s32 16, 1
    %1833 = vst [vmem:[%s1829] sm:%s1832] %v1830
    %s1834 = scalar_lea.vmem [#allocation7], 476
    %v1835 = vpack.c.bf16 0.0, %v9
    %s1837 = ssub.s32 16, 1
    %1838 = vst [vmem:[%s1834] sm:%s1837] %v1835
    %s1839 = scalar_lea.vmem [#allocation7], 480
    %v1840 = vpack.c.bf16 0.0, %v9
    %s1842 = ssub.s32 16, 1
    %1843 = vst [vmem:[%s1839] sm:%s1842] %v1840
    %s1844 = scalar_lea.vmem [#allocation7], 484
    %v1845 = vpack.c.bf16 0.0, %v9
    %s1847 = ssub.s32 16, 1
    %1848 = vst [vmem:[%s1844] sm:%s1847] %v1845
    %s1849 = scalar_lea.vmem [#allocation7], 488
    %v1850 = vpack.c.bf16 0.0, %v9
    %s1852 = ssub.s32 16, 1
    %1853 = vst [vmem:[%s1849] sm:%s1852] %v1850
    %s1854 = scalar_lea.vmem [#allocation7], 492
    %v1855 = vpack.c.bf16 0.0, %v9
    %s1857 = ssub.s32 16, 1
    %1858 = vst [vmem:[%s1854] sm:%s1857] %v1855
    %s1859 = scalar_lea.vmem [#allocation7], 496
    %v1860 = vpack.c.bf16 0.0, %v9
    %s1862 = ssub.s32 16, 1
    %1863 = vst [vmem:[%s1859] sm:%s1862] %v1860
    %s1864 = scalar_lea.vmem [#allocation7], 500
    %v1865 = vpack.c.bf16 0.0, %v9
    %s1867 = ssub.s32 16, 1
    %1868 = vst [vmem:[%s1864] sm:%s1867] %v1865
    %s1869 = scalar_lea.vmem [#allocation7], 504
    %v1870 = vpack.c.bf16 0.0, %v9
    %s1872 = ssub.s32 16, 1
    %1873 = vst [vmem:[%s1869] sm:%s1872] %v1870
    %s1874 = scalar_lea.vmem [#allocation7], 508
    %v1875 = vpack.c.bf16 0.0, %v9
    %s1877 = ssub.s32 16, 1
    %1878 = vst [vmem:[%s1874] sm:%s1877] %v1875
    %v1879 = vld [vmem:[%s0] sm:$0xf]
    %v1880 = vld [vmem:[#allocation7] sm:$0xff]
    %v1881 = vld [vmem:[#allocation7 + $0x8] sm:$0xff]
    %v1882 = vld [vmem:[#allocation7 + $0x10] sm:$0xff]
    %v1883 = vld [vmem:[#allocation7 + $0x18] sm:$0xff]
    %v1884 = vld [vmem:[#allocation7 + $0x20] sm:$0xff]
    %v1885 = vld [vmem:[#allocation7 + $0x28] sm:$0xff]
    %v1886 = vld [vmem:[#allocation7 + $0x30] sm:$0xff]
    %v1887 = vld [vmem:[#allocation7 + $0x38] sm:$0xff]
    %v1888 = vld [vmem:[#allocation7 + $0x40] sm:$0xff]
    %v1889 = vld [vmem:[#allocation7 + $0x48] sm:$0xff]
    %v1890 = vld [vmem:[#allocation7 + $0x50] sm:$0xff]
    %v1891 = vld [vmem:[#allocation7 + $0x58] sm:$0xff]
    %v1892 = vld [vmem:[#allocation7 + $0x60] sm:$0xff]
    %v1893 = vld [vmem:[#allocation7 + $0x68] sm:$0xff]
    %v1894 = vld [vmem:[#allocation7 + $0x70] sm:$0xff]
    %v1895 = vld [vmem:[#allocation7 + $0x78] sm:$0xff]
    %v1896 = vld [vmem:[#allocation7 + $0x80] sm:$0xff]
    %v1897 = vld [vmem:[#allocation7 + $0x88] sm:$0xff]
    %v1898 = vld [vmem:[#allocation7 + $0x90] sm:$0xff]
    %v1899 = vld [vmem:[#allocation7 + $0x98] sm:$0xff]
    %v1900 = vld [vmem:[#allocation7 + $0xa0] sm:$0xff]
    %v1901 = vld [vmem:[#allocation7 + $0xa8] sm:$0xff]
    %v1902 = vld [vmem:[#allocation7 + $0xb0] sm:$0xff]
    %v1903 = vld [vmem:[#allocation7 + $0xb8] sm:$0xff]
    %v1904 = vld [vmem:[#allocation7 + $0xc0] sm:$0xff]
    %v1905 = vld [vmem:[#allocation7 + $0xc8] sm:$0xff]
    %v1906 = vld [vmem:[#allocation7 + $0xd0] sm:$0xff]
    %v1907 = vld [vmem:[#allocation7 + $0xd8] sm:$0xff]
    %v1908 = vld [vmem:[#allocation7 + $0xe0] sm:$0xff]
    %v1909 = vld [vmem:[#allocation7 + $0xe8] sm:$0xff]
    %v1910 = vld [vmem:[#allocation7 + $0xf0] sm:$0xff]
    %v1911 = vld [vmem:[#allocation7 + $0xf8] sm:$0xff]
    %v1912 = vld [vmem:[#allocation7 + $0x100] sm:$0xff]
    %v1913 = vld [vmem:[#allocation7 + $0x108] sm:$0xff]
    %v1914 = vld [vmem:[#allocation7 + $0x110] sm:$0xff]
    %v1915 = vld [vmem:[#allocation7 + $0x118] sm:$0xff]
    %v1916 = vld [vmem:[#allocation7 + $0x120] sm:$0xff]
    %v1917 = vld [vmem:[#allocation7 + $0x128] sm:$0xff]
    %v1918 = vld [vmem:[#allocation7 + $0x130] sm:$0xff]
    %v1919 = vld [vmem:[#allocation7 + $0x138] sm:$0xff]
    %v1920 = vld [vmem:[#allocation7 + $0x140] sm:$0xff]
    %v1921 = vld [vmem:[#allocation7 + $0x148] sm:$0xff]
    %v1922 = vld [vmem:[#allocation7 + $0x150] sm:$0xff]
    %v1923 = vld [vmem:[#allocation7 + $0x158] sm:$0xff]
    %v1924 = vld [vmem:[#allocation7 + $0x160] sm:$0xff]
    %v1925 = vld [vmem:[#allocation7 + $0x168] sm:$0xff]
    %v1926 = vld [vmem:[#allocation7 + $0x170] sm:$0xff]
    %v1927 = vld [vmem:[#allocation7 + $0x178] sm:$0xff]
    %v1928 = vld [vmem:[#allocation7 + $0x180] sm:$0xff]
    %v1929 = vld [vmem:[#allocation7 + $0x188] sm:$0xff]
    %v1930 = vld [vmem:[#allocation7 + $0x190] sm:$0xff]
    %v1931 = vld [vmem:[#allocation7 + $0x198] sm:$0xff]
    %v1932 = vld [vmem:[#allocation7 + $0x1a0] sm:$0xff]
    %v1933 = vld [vmem:[#allocation7 + $0x1a8] sm:$0xff]
    %v1934 = vld [vmem:[#allocation7 + $0x1b0] sm:$0xff]
    %v1935 = vld [vmem:[#allocation7 + $0x1b8] sm:$0xff]
    %v1936 = vld [vmem:[#allocation7 + $0x1c0] sm:$0xff]
    %v1937 = vld [vmem:[#allocation7 + $0x1c8] sm:$0xff]
    %v1938 = vld [vmem:[#allocation7 + $0x1d0] sm:$0xff]
    %v1939 = vld [vmem:[#allocation7 + $0x1d8] sm:$0xff]
    %v1940 = vld [vmem:[#allocation7 + $0x1e0] sm:$0xff]
    %v1941 = vld [vmem:[#allocation7 + $0x1e8] sm:$0xff]
    %v1942 = vld [vmem:[#allocation7 + $0x1f0] sm:$0xff]
    %v1943 = vld [vmem:[#allocation7 + $0x1f8] sm:$0xff]
    %v2008 = vunpack.c.l.b16 %v1880
    %v2009 = vunpack.c.h.b16 %v1880
    %v2010 = vunpack.c.l.b16 %v1881
    %v2011 = vunpack.c.h.b16 %v1881
    %v2012 = vunpack.c.l.b16 %v1882
    %v2013 = vunpack.c.h.b16 %v1882
    %v2014 = vunpack.c.l.b16 %v1883
    %v2015 = vunpack.c.h.b16 %v1883
    %v2016 = vunpack.c.l.b16 %v1884
    %v2017 = vunpack.c.h.b16 %v1884
    %v2018 = vunpack.c.l.b16 %v1885
    %v2019 = vunpack.c.h.b16 %v1885
    %v2020 = vunpack.c.l.b16 %v1886
    %v2021 = vunpack.c.h.b16 %v1886
    %v2022 = vunpack.c.l.b16 %v1887
    %v2023 = vunpack.c.h.b16 %v1887
    %v2024 = vunpack.c.l.b16 %v1888
    %v2025 = vunpack.c.h.b16 %v1888
    %v2026 = vunpack.c.l.b16 %v1889
    %v2027 = vunpack.c.h.b16 %v1889
    %v2028 = vunpack.c.l.b16 %v1890
    %v2029 = vunpack.c.h.b16 %v1890
    %v2030 = vunpack.c.l.b16 %v1891
    %v2031 = vunpack.c.h.b16 %v1891
    %v2032 = vunpack.c.l.b16 %v1892
    %v2033 = vunpack.c.h.b16 %v1892
    %v2034 = vunpack.c.l.b16 %v1893
    %v2035 = vunpack.c.h.b16 %v1893
    %v2036 = vunpack.c.l.b16 %v1894
    %v2037 = vunpack.c.h.b16 %v1894
    %v2038 = vunpack.c.l.b16 %v1895
    %v2039 = vunpack.c.h.b16 %v1895
    %v2040 = vunpack.c.l.b16 %v1896
    %v2041 = vunpack.c.h.b16 %v1896
    %v2042 = vunpack.c.l.b16 %v1897
    %v2043 = vunpack.c.h.b16 %v1897
    %v2044 = vunpack.c.l.b16 %v1898
    %v2045 = vunpack.c.h.b16 %v1898
    %v2046 = vunpack.c.l.b16 %v1899
    %v2047 = vunpack.c.h.b16 %v1899
    %v2048 = vunpack.c.l.b16 %v1900
    %v2049 = vunpack.c.h.b16 %v1900
    %v2050 = vunpack.c.l.b16 %v1901
    %v2051 = vunpack.c.h.b16 %v1901
    %v2052 = vunpack.c.l.b16 %v1902
    %v2053 = vunpack.c.h.b16 %v1902
    %v2054 = vunpack.c.l.b16 %v1903
    %v2055 = vunpack.c.h.b16 %v1903
    %v2056 = vunpack.c.l.b16 %v1904
    %v2057 = vunpack.c.h.b16 %v1904
    %v2058 = vunpack.c.l.b16 %v1905
    %v2059 = vunpack.c.h.b16 %v1905
    %v2060 = vunpack.c.l.b16 %v1906
    %v2061 = vunpack.c.h.b16 %v1906
    %v2062 = vunpack.c.l.b16 %v1907
    %v2063 = vunpack.c.h.b16 %v1907
    %v2064 = vunpack.c.l.b16 %v1908
    %v2065 = vunpack.c.h.b16 %v1908
    %v2066 = vunpack.c.l.b16 %v1909
    %v2067 = vunpack.c.h.b16 %v1909
    %v2068 = vunpack.c.l.b16 %v1910
    %v2069 = vunpack.c.h.b16 %v1910
    %v2070 = vunpack.c.l.b16 %v1911
    %v2071 = vunpack.c.h.b16 %v1911
    %v2072 = vunpack.c.l.b16 %v1912
    %v2073 = vunpack.c.h.b16 %v1912
    %v2074 = vunpack.c.l.b16 %v1913
    %v2075 = vunpack.c.h.b16 %v1913
    %v2076 = vunpack.c.l.b16 %v1914
    %v2077 = vunpack.c.h.b16 %v1914
    %v2078 = vunpack.c.l.b16 %v1915
    %v2079 = vunpack.c.h.b16 %v1915
    %v2080 = vunpack.c.l.b16 %v1916
    %v2081 = vunpack.c.h.b16 %v1916
    %v2082 = vunpack.c.l.b16 %v1917
    %v2083 = vunpack.c.h.b16 %v1917
    %v2084 = vunpack.c.l.b16 %v1918
    %v2085 = vunpack.c.h.b16 %v1918
    %v2086 = vunpack.c.l.b16 %v1919
    %v2087 = vunpack.c.h.b16 %v1919
    %v2088 = vunpack.c.l.b16 %v1920
    %v2089 = vunpack.c.h.b16 %v1920
    %v2090 = vunpack.c.l.b16 %v1921
    %v2091 = vunpack.c.h.b16 %v1921
    %v2092 = vunpack.c.l.b16 %v1922
    %v2093 = vunpack.c.h.b16 %v1922
    %v2094 = vunpack.c.l.b16 %v1923
    %v2095 = vunpack.c.h.b16 %v1923
    %v2096 = vunpack.c.l.b16 %v1924
    %v2097 = vunpack.c.h.b16 %v1924
    %v2098 = vunpack.c.l.b16 %v1925
    %v2099 = vunpack.c.h.b16 %v1925
    %v2100 = vunpack.c.l.b16 %v1926
    %v2101 = vunpack.c.h.b16 %v1926
    %v2102 = vunpack.c.l.b16 %v1927
    %v2103 = vunpack.c.h.b16 %v1927
    %v2104 = vunpack.c.l.b16 %v1928
    %v2105 = vunpack.c.h.b16 %v1928
    %v2106 = vunpack.c.l.b16 %v1929
    %v2107 = vunpack.c.h.b16 %v1929
    %v2108 = vunpack.c.l.b16 %v1930
    %v2109 = vunpack.c.h.b16 %v1930
    %v2110 = vunpack.c.l.b16 %v1931
    %v2111 = vunpack.c.h.b16 %v1931
    %v2112 = vunpack.c.l.b16 %v1932
    %v2113 = vunpack.c.h.b16 %v1932
    %v2114 = vunpack.c.l.b16 %v1933
    %v2115 = vunpack.c.h.b16 %v1933
    %v2116 = vunpack.c.l.b16 %v1934
    %v2117 = vunpack.c.h.b16 %v1934
    %v2118 = vunpack.c.l.b16 %v1935
    %v2119 = vunpack.c.h.b16 %v1935
    %v2120 = vunpack.c.l.b16 %v1936
    %v2121 = vunpack.c.h.b16 %v1936
    %v2122 = vunpack.c.l.b16 %v1937
    %v2123 = vunpack.c.h.b16 %v1937
    %v2124 = vunpack.c.l.b16 %v1938
    %v2125 = vunpack.c.h.b16 %v1938
    %v2126 = vunpack.c.l.b16 %v1939
    %v2127 = vunpack.c.h.b16 %v1939
    %v2128 = vunpack.c.l.b16 %v1940
    %v2129 = vunpack.c.h.b16 %v1940
    %v2130 = vunpack.c.l.b16 %v1941
    %v2131 = vunpack.c.h.b16 %v1941
    %v2132 = vunpack.c.l.b16 %v1942
    %v2133 = vunpack.c.h.b16 %v1942
    %v2134 = vunpack.c.l.b16 %v1943
    %v2135 = vunpack.c.h.b16 %v1943
    %v2136 = vpack.c.b16 %v2016, %v2008
    %v2137 = vpack.c.b16 %v2017, %v2009
    %v2138 = vpack.c.b16 %v2018, %v2010
    %v2139 = vpack.c.b16 %v2019, %v2011
    %v2140 = vpack.c.b16 %v2020, %v2012
    %v2141 = vpack.c.b16 %v2021, %v2013
    %v2142 = vpack.c.b16 %v2022, %v2014
    %v2143 = vpack.c.b16 %v2023, %v2015
    %v2144 = vpack.c.b16 %v2032, %v2024
    %v2145 = vpack.c.b16 %v2033, %v2025
    %v2146 = vpack.c.b16 %v2034, %v2026
    %v2147 = vpack.c.b16 %v2035, %v2027
    %v2148 = vpack.c.b16 %v2036, %v2028
    %v2149 = vpack.c.b16 %v2037, %v2029
    %v2150 = vpack.c.b16 %v2038, %v2030
    %v2151 = vpack.c.b16 %v2039, %v2031
    %v2152 = vpack.c.b16 %v2048, %v2040
    %v2153 = vpack.c.b16 %v2049, %v2041
    %v2154 = vpack.c.b16 %v2050, %v2042
    %v2155 = vpack.c.b16 %v2051, %v2043
    %v2156 = vpack.c.b16 %v2052, %v2044
    %v2157 = vpack.c.b16 %v2053, %v2045
    %v2158 = vpack.c.b16 %v2054, %v2046
    %v2159 = vpack.c.b16 %v2055, %v2047
    %v2160 = vpack.c.b16 %v2064, %v2056
    %v2161 = vpack.c.b16 %v2065, %v2057
    %v2162 = vpack.c.b16 %v2066, %v2058
    %v2163 = vpack.c.b16 %v2067, %v2059
    %v2164 = vpack.c.b16 %v2068, %v2060
    %v2165 = vpack.c.b16 %v2069, %v2061
    %v2166 = vpack.c.b16 %v2070, %v2062
    %v2167 = vpack.c.b16 %v2071, %v2063
    %v2168 = vpack.c.b16 %v2080, %v2072
    %v2169 = vpack.c.b16 %v2081, %v2073
    %v2170 = vpack.c.b16 %v2082, %v2074
    %v2171 = vpack.c.b16 %v2083, %v2075
    %v2172 = vpack.c.b16 %v2084, %v2076
    %v2173 = vpack.c.b16 %v2085, %v2077
    %v2174 = vpack.c.b16 %v2086, %v2078
    %v2175 = vpack.c.b16 %v2087, %v2079
    %v2176 = vpack.c.b16 %v2096, %v2088
    %v2177 = vpack.c.b16 %v2097, %v2089
    %v2178 = vpack.c.b16 %v2098, %v2090
    %v2179 = vpack.c.b16 %v2099, %v2091
    %v2180 = vpack.c.b16 %v2100, %v2092
    %v2181 = vpack.c.b16 %v2101, %v2093
    %v2182 = vpack.c.b16 %v2102, %v2094
    %v2183 = vpack.c.b16 %v2103, %v2095
    %v2184 = vpack.c.b16 %v2112, %v2104
    %v2185 = vpack.c.b16 %v2113, %v2105
    %v2186 = vpack.c.b16 %v2114, %v2106
    %v2187 = vpack.c.b16 %v2115, %v2107
    %v2188 = vpack.c.b16 %v2116, %v2108
    %v2189 = vpack.c.b16 %v2117, %v2109
    %v2190 = vpack.c.b16 %v2118, %v2110
    %v2191 = vpack.c.b16 %v2119, %v2111
    %v2192 = vpack.c.b16 %v2128, %v2120
    %v2193 = vpack.c.b16 %v2129, %v2121
    %v2194 = vpack.c.b16 %v2130, %v2122
    %v2195 = vpack.c.b16 %v2131, %v2123
    %v2196 = vpack.c.b16 %v2132, %v2124
    %v2197 = vpack.c.b16 %v2133, %v2125
    %v2198 = vpack.c.b16 %v2134, %v2126
    %v2199 = vpack.c.b16 %v2135, %v2127
    %2264 = vmatpush.bf16.msra.mxu0 %v2192
    %2265 = vmatpush.bf16.msra.mxu0 %v2184
    %2266 = vmatpush.bf16.msra.mxu0 %v2176
    %2267 = vmatpush.bf16.msra.mxu0 %v2168
    %2268 = vmatpush.bf16.msra.mxu0 %v2160
    %2269 = vmatpush.bf16.msra.mxu0 %v2152
    %2270 = vmatpush.bf16.msra.mxu0 %v2144
    %2271 = vmatpush.bf16.msra.mxu0 %v2136
    %2272 = vmatmul.bf16.gmra.mxu0 %v1879
    %v2273 = vpop.f32.mrf.mxu0
    %v2274 = vadd.f32 0.0, %v2273
    %v2275 = vpop.f32.mrf.mxu0
    %2276 = vdwg.mxu0
    %2277 = vmatpush.bf16.msra.mxu0 %v2193
    %2278 = vmatpush.bf16.msra.mxu0 %v2185
    %2279 = vmatpush.bf16.msra.mxu0 %v2177
    %2280 = vmatpush.bf16.msra.mxu0 %v2169
    %2281 = vmatpush.bf16.msra.mxu0 %v2161
    %2282 = vmatpush.bf16.msra.mxu0 %v2153
    %2283 = vmatpush.bf16.msra.mxu0 %v2145
    %2284 = vmatpush.bf16.msra.mxu0 %v2137
    %2285 = vmatmul.bf16.gmra.mxu0 %v1879
    %v2286 = vpop.f32.mrf.mxu0
    %v2287 = vadd.f32 0.0, %v2286
    %v2288 = vpop.f32.mrf.mxu0
    %2289 = vdwg.mxu0
    %2290 = vmatpush.bf16.msra.mxu0 %v2194
    %2291 = vmatpush.bf16.msra.mxu0 %v2186
    %2292 = vmatpush.bf16.msra.mxu0 %v2178
    %2293 = vmatpush.bf16.msra.mxu0 %v2170
    %2294 = vmatpush.bf16.msra.mxu0 %v2162
    %2295 = vmatpush.bf16.msra.mxu0 %v2154
    %2296 = vmatpush.bf16.msra.mxu0 %v2146
    %2297 = vmatpush.bf16.msra.mxu0 %v2138
    %2298 = vmatmul.bf16.gmra.mxu0 %v1879
    %v2299 = vpop.f32.mrf.mxu0
    %v2300 = vadd.f32 0.0, %v2299
    %v2301 = vpop.f32.mrf.mxu0
    %2302 = vdwg.mxu0
    %2303 = vmatpush.bf16.msra.mxu0 %v2195
    %2304 = vmatpush.bf16.msra.mxu0 %v2187
    %2305 = vmatpush.bf16.msra.mxu0 %v2179
    %2306 = vmatpush.bf16.msra.mxu0 %v2171
    %2307 = vmatpush.bf16.msra.mxu0 %v2163
    %2308 = vmatpush.bf16.msra.mxu0 %v2155
    %2309 = vmatpush.bf16.msra.mxu0 %v2147
    %2310 = vmatpush.bf16.msra.mxu0 %v2139
    %2311 = vmatmul.bf16.gmra.mxu0 %v1879
    %v2312 = vpop.f32.mrf.mxu0
    %v2313 = vadd.f32 0.0, %v2312
    %v2314 = vpop.f32.mrf.mxu0
    %2315 = vdwg.mxu0
    %2316 = vmatpush.bf16.msra.mxu0 %v2196
    %2317 = vmatpush.bf16.msra.mxu0 %v2188
    %2318 = vmatpush.bf16.msra.mxu0 %v2180
    %2319 = vmatpush.bf16.msra.mxu0 %v2172
    %2320 = vmatpush.bf16.msra.mxu0 %v2164
    %2321 = vmatpush.bf16.msra.mxu0 %v2156
    %2322 = vmatpush.bf16.msra.mxu0 %v2148
    %2323 = vmatpush.bf16.msra.mxu0 %v2140
    %2324 = vmatmul.bf16.gmra.mxu0 %v1879
    %v2325 = vpop.f32.mrf.mxu0
    %v2326 = vadd.f32 0.0, %v2325
    %v2327 = vpop.f32.mrf.mxu0
    %2328 = vdwg.mxu0
    %2329 = vmatpush.bf16.msra.mxu0 %v2197
    %2330 = vmatpush.bf16.msra.mxu0 %v2189
    %2331 = vmatpush.bf16.msra.mxu0 %v2181
    %2332 = vmatpush.bf16.msra.mxu0 %v2173
    %2333 = vmatpush.bf16.msra.mxu0 %v2165
    %2334 = vmatpush.bf16.msra.mxu0 %v2157
    %2335 = vmatpush.bf16.msra.mxu0 %v2149
    %2336 = vmatpush.bf16.msra.mxu0 %v2141
    %2337 = vmatmul.bf16.gmra.mxu0 %v1879
    %v2338 = vpop.f32.mrf.mxu0
    %v2339 = vadd.f32 0.0, %v2338
    %v2340 = vpop.f32.mrf.mxu0
    %2341 = vdwg.mxu0
    %2342 = vmatpush.bf16.msra.mxu0 %v2198
    %2343 = vmatpush.bf16.msra.mxu0 %v2190
    %2344 = vmatpush.bf16.msra.mxu0 %v2182
    %2345 = vmatpush.bf16.msra.mxu0 %v2174
    %2346 = vmatpush.bf16.msra.mxu0 %v2166
    %2347 = vmatpush.bf16.msra.mxu0 %v2158
    %2348 = vmatpush.bf16.msra.mxu0 %v2150
    %2349 = vmatpush.bf16.msra.mxu0 %v2142
    %2350 = vmatmul.bf16.gmra.mxu0 %v1879
    %v2351 = vpop.f32.mrf.mxu0
    %v2352 = vadd.f32 0.0, %v2351
    %v2353 = vpop.f32.mrf.mxu0
    %2354 = vdwg.mxu0
    %2355 = vmatpush.bf16.msra.mxu0 %v2199
    %2356 = vmatpush.bf16.msra.mxu0 %v2191
    %2357 = vmatpush.bf16.msra.mxu0 %v2183
    %2358 = vmatpush.bf16.msra.mxu0 %v2175
    %2359 = vmatpush.bf16.msra.mxu0 %v2167
    %2360 = vmatpush.bf16.msra.mxu0 %v2159
    %2361 = vmatpush.bf16.msra.mxu0 %v2151
    %2362 = vmatpush.bf16.msra.mxu0 %v2143
    %2363 = vmatmul.bf16.gmra.mxu0 %v1879
    %v2364 = vpop.f32.mrf.mxu0
    %v2365 = vadd.f32 0.0, %v2364
    %v2366 = vpop.f32.mrf.mxu0
    %2367 = vdwg.mxu0
    %v2368 = vadd.f32 %v2274, %v2287
    %v2369 = vadd.f32 %v2368, %v2300
    %v2370 = vadd.f32 %v2369, %v2313
    %2371 = vadd.xlane.f32.xlu0 %v2370
    %v2372 = vpop.xlane.xlu0 %2371
    %v2373 = vmul.f32 %v2274, %v2274
    %v2374 = vmul.f32 %v2287, %v2287
    %v2375 = vmul.f32 %v2300, %v2300
    %v2376 = vmul.f32 %v2313, %v2313
    %v2377 = vadd.f32 %v2373, %v2374
    %v2378 = vadd.f32 %v2377, %v2375
    %v2379 = vadd.f32 %v2378, %v2376
    %2380 = vadd.xlane.f32.xlu0 %v2379
    %v2381 = vpop.xlane.xlu0 %2380
    %v2382 = vmul.f32 %v2372, 0.001953125
    %v2383 = vmul.f32 %v2381, 0.001953125
    %v2384 = vmul.f32 %v2382, %v2382
    %v2385 = vsub.f32 %v2383, %v2384
    %v2386 = vmax.f32 %v2385, 0.0
    %v2387 = vadd.f32 %v2386, 1e-06
    %v2388 = vrsqrt.pop %v2387
    %v2389 = vmul.f32 %v2388, %v2387
    %v2390 = vmul.f32 %v2389, %v2388
    %v2391 = vmul.f32 0.5, %v2390
    %v2392 = vsub.f32 1.5, %v2391
    %v2393 = vmul.f32 %v2388, %v2392
    %vm2394 = vweird.f32 %v2387
    %vm2395 = vweird.f32 %v2388
    %vm2396 = vmor %vm2394, %vm2395
    %v2397 = vsel %vm2396, %v2388, %v2393
    %v2398 = vsub.f32 %v2274, %v2382
    %v2399 = vsub.f32 %v2287, %v2382
    %v2400 = vsub.f32 %v2300, %v2382
    %v2401 = vsub.f32 %v2313, %v2382
    %v2402 = vmul.f32 %v2398, %v2397
    %v2403 = vmul.f32 %v2399, %v2397
    %v2404 = vmul.f32 %v2400, %v2397
    %v2405 = vmul.f32 %v2401, %v2397
    %vm2406 = vcmp.ge.f32.partialorder %v2402, 0.0
    %vm2407 = vcmp.ge.f32.partialorder %v2403, 0.0
    %vm2408 = vcmp.ge.f32.partialorder %v2404, 0.0
    %vm2409 = vcmp.ge.f32.partialorder %v2405, 0.0
    %v2410 = vmul.f32 %v2402, 0.2
    %v2411 = vmul.f32 %v2403, 0.2
    %v2412 = vmul.f32 %v2404, 0.2
    %v2413 = vmul.f32 %v2405, 0.2
    %v2414 = vsel %vm2406, %v2402, %v2410
    %v2415 = vsel %vm2407, %v2403, %v2411
    %v2416 = vsel %vm2408, %v2404, %v2412
    %v2417 = vsel %vm2409, %v2405, %v2413
    %2418 = vst [vmem:[%s3] sm:$0xff] %v2414
    %2419 = vst [vmem:[%s3 + $0x8] sm:$0xff] %v2415
    %2420 = vst [vmem:[%s3 + $0x10] sm:$0xff] %v2416
    %2421 = vst [vmem:[%s3 + $0x18] sm:$0xff] %v2417
    %v2422 = vadd.f32 %v2326, %v2339
    %v2423 = vadd.f32 %v2422, %v2352
    %v2424 = vadd.f32 %v2423, %v2365
    %2425 = vadd.xlane.f32.xlu0 %v2424
    %v2426 = vpop.xlane.xlu0 %2425
    %v2427 = vmul.f32 %v2326, %v2326
    %v2428 = vmul.f32 %v2339, %v2339
    %v2429 = vmul.f32 %v2352, %v2352
    %v2430 = vmul.f32 %v2365, %v2365
    %v2431 = vadd.f32 %v2427, %v2428
    %v2432 = vadd.f32 %v2431, %v2429
    %v2433 = vadd.f32 %v2432, %v2430
    %2434 = vadd.xlane.f32.xlu0 %v2433
    %v2435 = vpop.xlane.xlu0 %2434
    %v2436 = vmul.f32 %v2426, 0.001953125
    %v2437 = vmul.f32 %v2435, 0.001953125
    %v2438 = vmul.f32 %v2436, %v2436
    %v2439 = vsub.f32 %v2437, %v2438
    %v2440 = vmax.f32 %v2439, 0.0
    %v2441 = vadd.f32 %v2440, 1e-06
    %v2442 = vrsqrt.pop %v2441
    %v2443 = vmul.f32 %v2442, %v2441
    %v2444 = vmul.f32 %v2443, %v2442
    %v2445 = vmul.f32 0.5, %v2444
    %v2446 = vsub.f32 1.5, %v2445
    %v2447 = vmul.f32 %v2442, %v2446
    %vm2448 = vweird.f32 %v2441
    %vm2449 = vweird.f32 %v2442
    %vm2450 = vmor %vm2448, %vm2449
    %v2451 = vsel %vm2450, %v2442, %v2447
    %v2452 = vsub.f32 %v2326, %v2436
    %v2453 = vsub.f32 %v2339, %v2436
    %v2454 = vsub.f32 %v2352, %v2436
    %v2455 = vsub.f32 %v2365, %v2436
    %v2456 = vmul.f32 %v2452, %v2451
    %v2457 = vmul.f32 %v2453, %v2451
    %v2458 = vmul.f32 %v2454, %v2451
    %v2459 = vmul.f32 %v2455, %v2451
    %vm2460 = vcmp.ge.f32.partialorder %v2456, 0.0
    %vm2461 = vcmp.ge.f32.partialorder %v2457, 0.0
    %vm2462 = vcmp.ge.f32.partialorder %v2458, 0.0
    %vm2463 = vcmp.ge.f32.partialorder %v2459, 0.0
    %v2464 = vmul.f32 %v2456, 0.2
    %v2465 = vmul.f32 %v2457, 0.2
    %v2466 = vmul.f32 %v2458, 0.2
    %v2467 = vmul.f32 %v2459, 0.2
    %v2468 = vsel %vm2460, %v2456, %v2464
    %v2469 = vsel %vm2461, %v2457, %v2465
    %v2470 = vsel %vm2462, %v2458, %v2466
    %v2471 = vsel %vm2463, %v2459, %v2467
    %s2472 = scalar_lea.vmem %s3, 32
    %2473 = vst [vmem:[%s2472] sm:$0xff] %v2468
    %2474 = vst [vmem:[%s2472 + $0x8] sm:$0xff] %v2469
    %2475 = vst [vmem:[%s2472 + $0x10] sm:$0xff] %v2470
    %2476 = vst [vmem:[%s2472 + $0x18] sm:$0xff] %v2471
    // Predicated region
    $region10: #{conv_dil_block.2} parent=1 // pred_check
      _
    $region11: #{conv_dil_block.2} parent=1 // pred_check_branch
      %2478 = sbr.rel (0) target = $region13
    $region12: #{conv_dil_block.2} parent=1 // pred_region
      _
    $region13: #{conv_dil_block.2} parent=1 // pred_fallthru
      _
    // Predicated region
    $region14: #{conv_dil_block.2} parent=1 // pred_check
      _
    $region15: #{conv_dil_block.2} parent=1 // pred_check_branch
      %2480 = sbr.rel (0) target = $region17
    $region16: #{conv_dil_block.2} parent=1 // pred_region
      _
    $region17: #{conv_dil_block.2} parent=1 // pred_fallthru
      _

</llo_original>
